<compile_context>
chip_gen: v7x
topology: tpu7x:2x2x1
jax: 0.10.0
libtpu: 0.0.40
codegen_flags: <defaults>
</compile_context>

<pallas_src>
import functools

import jax
import jax.numpy as jnp
from jax import lax
from jax.experimental import pallas as pl
from jax.experimental.pallas import tpu as pltpu


def attention_kernel(x_ref, wqkv_ref, wout_ref, bout_ref, o_ref,
                     *, heads, dim_heads):
    bt, N, D = x_ref.shape            # batch-tile, sequence, embedding
    H, Dh = heads, dim_heads
    G = 3 * H                         # {q,k,v} x heads, flattened leading axis
    BH = H * bt                       # (head, batch) flattened attention batch
    R = bt * N                        # rows per step

    x = x_ref[...]                                        # (bt, N, D) f32
    x2 = x.reshape(R, D).astype(jnp.bfloat16)             # row-flattened activations

    # ---- fused head-batched QKV projection: (G, R, D) x (G, D, Dh) ----
    # (scale Dh**-0.5 is pre-folded into the q groups of wqkv host-side)
    xb = jnp.broadcast_to(x2[None], (G, R, D))            # leading-axis bcast
    wqkv = wqkv_ref[...]                                   # (G, D, Dh) bf16
    qkv = lax.dot_general(
        xb, wqkv,
        dimension_numbers=(((2,), (1,)), ((0,), (0,))),    # contract D, batch G
        preferred_element_type=jnp.float32)                # (G, R, Dh) f32

    # Regroup leading dims only (lane dim untouched): (G, bt*N, Dh) -> (G*bt, N, Dh)
    qkv = qkv.reshape(G * bt, N, Dh)
    q = qkv[0 * BH:1 * BH].astype(jnp.bfloat16)            # (BH, N, Dh)
    k = qkv[1 * BH:2 * BH].astype(jnp.bfloat16)
    v = qkv[2 * BH:3 * BH].astype(jnp.bfloat16)

    # ---- scaled dot-product attention, batched over (head, batch) ----
    dots = lax.dot_general(
        q, k,
        dimension_numbers=(((2,), (2,)), ((0,), (0,))),    # contract Dh; no .T
        preferred_element_type=jnp.float32)                # (BH, N, N) f32
    # TODO(synk): optional `mask` branch of Attention.forward (data-dependent
    # masked_fill) is not implemented; the module is exercised with mask=None.
    dots = dots - jnp.max(dots, axis=-1, keepdims=True)
    e = jnp.exp(dots)                                      # (BH, N, N) f32
    denom = jnp.sum(e, axis=-1, keepdims=True)             # (BH, N, 1)  f32

    # Un-normalized attn @ V, then normalize on the (BH, N, Dh) result
    # (cheaper than normalizing the (BH, N, N) probabilities).
    out = lax.dot_general(
        e.astype(jnp.bfloat16), v,
        dimension_numbers=(((2,), (1,)), ((0,), (0,))),    # contract keys
        preferred_element_type=jnp.float32)                # (BH, N, Dh) f32
    out = out * pl.reciprocal(denom, approx=True)          # softmax normalize

    # ---- output projection, head-batched, then reduce over heads ----
    out4 = out.reshape(H, bt, N, Dh)                       # regroup leading dims
    wo = wout_ref[...]                                     # (H, Dh, D) bf16
    z = lax.dot_general(
        out4.astype(jnp.bfloat16), wo,
        dimension_numbers=(((3,), (1,)), ((0,), (0,))),    # contract Dh, batch H
        preferred_element_type=jnp.float32)                # (H, bt, N, D) f32
    y = jnp.sum(z, axis=0) + bout_ref[...]                 # (bt, N, D); dropout = identity
    o_ref[...] = y


def attention(x, wqkv, wout, bout, *, heads, dim_heads, batch_tile=None):
    """Equivalent of Attention.forward(x, mask=None) in eval mode.

    x:    (B, N, D) float32
    wqkv: (D, 3*H*Dh) — stored so y = x @ W (== torch x @ W.T), bias-free
    wout: (H*Dh, D),  bout: (D,)
    """
    B, N, D = x.shape
    H, Dh = heads, dim_heads
    inner = H * Dh
    assert wqkv.shape == (D, 3 * inner)
    assert wout.shape == (inner, D) and bout.shape == (D,)

    bt = B if batch_tile is None else batch_tile
    assert B % bt == 0

    # One-time host-side weight re-layout + bf16 cast: heads on a leading axis
    # so the kernel never slices heads out of the lane dimension.  The softmax
    # scale is folded into the q groups (first H of the leading axis).
    wqkv_r = (wqkv.reshape(D, 3, H, Dh).transpose(1, 2, 0, 3)
              .reshape(3 * H, D, Dh))
    wqkv_r = wqkv_r.at[:H].multiply(Dh ** -0.5).astype(jnp.bfloat16)
    wout_r = wout.reshape(H, Dh, D).astype(jnp.bfloat16)
    bout_r = bout.reshape(1, D).astype(jnp.float32)

    kernel = functools.partial(attention_kernel, heads=H, dim_heads=Dh)

    return pl.pallas_call(
        kernel,
        out_shape=jax.ShapeDtypeStruct((B, N, D), jnp.float32),
        grid_spec=pltpu.PrefetchScalarGridSpec(
            num_scalar_prefetch=0,
            grid=(B // bt,),
            in_specs=[
                pl.BlockSpec((bt, N, D), lambda i: (i, 0, 0)),        # x tile
                pl.BlockSpec((3 * H, D, Dh), lambda i: (0, 0, 0)),    # QKV weights (resident)
                pl.BlockSpec((H, Dh, D), lambda i: (0, 0, 0)),        # out-proj weights
                pl.BlockSpec((1, D), lambda i: (0, 0)),               # out-proj bias
            ],
            out_specs=pl.BlockSpec((bt, N, D), lambda i: (i, 0, 0)),
        ),
        compiler_params=pltpu.CompilerParams(
            dimension_semantics=("parallel",)),
    )(x, wqkv_r, wout_r, bout_r)


def attention_ref(x, wqkv, wout, bout, *, heads, dim_heads):
    """Pure-JAX f32 reference matching the PyTorch module (mask=None, eval)."""
    B, N, D = x.shape
    inner = heads * dim_heads
    qkv = x @ wqkv
    q, k, v = jnp.split(qkv, 3, axis=-1)

    def split_heads(t):
        return t.reshape(B, N, heads, dim_heads).transpose(0, 2, 1, 3)

    q, k, v = map(split_heads, (q, k, v))
    dots = jnp.einsum('bhid,bhjd->bhij', q, k) * (dim_heads ** -0.5)
    attn = jax.nn.softmax(dots, axis=-1)
    out = jnp.einsum('bhij,bhjd->bhid', attn, v)
    out = out.transpose(0, 2, 1, 3).reshape(B, N, inner)
    return out @ wout + bout.reshape(1, 1, D)


if __name__ == "__main__":
    # Small shapes consistent with the module: x is (B, N, dim).
    B, N = 2, 8
    dim, heads, dim_heads = 32, 4, 8
    dropout = 0.1          # identity in eval mode
    inner = heads * dim_heads

    key = jax.random.PRNGKey(0)
    kx, k1, k2, k3 = jax.random.split(key, 4)
    x = jax.random.normal(kx, (B, N, dim), jnp.float32)

    # Parameters in the PyTorch layout (so y = x @ W matches torch's x @ W.T).
    bq = 1.0 / jnp.sqrt(dim)
    wqkv = jax.random.uniform(k1, (dim, 3 * inner), jnp.float32, -bq, bq)
    bo = 1.0 / jnp.sqrt(inner)
    wout = jax.random.uniform(k2, (inner, dim), jnp.float32, -bo, bo)
    bout = jax.random.uniform(k3, (dim,), jnp.float32, -bo, bo)

    y = attention(x, wqkv, wout, bout, heads=heads, dim_heads=dim_heads)
    y = jax.block_until_ready(y)
    assert y.shape == (B, N, dim)

    y_ref = jax.block_until_ready(
        attention_ref(x, wqkv, wout, bout, heads=heads, dim_heads=dim_heads))
    max_err = float(jnp.max(jnp.abs(y - y_ref)))
    assert bool(jnp.allclose(y, y_ref, atol=5e-2, rtol=5e-2)), max_err

    print("KERNEL_OK")
</pallas_src>

<mosaic_0001>
module attributes {stable_mosaic.version = 11 : i64} {
  func.func @attention_kernel(%arg0: i32, %arg1: memref<2x8x32xf32, #tpu.memory_space<vmem>>, %arg2: memref<12x32x8xbf16, #tpu.memory_space<vmem>>, %arg3: memref<4x8x32xbf16, #tpu.memory_space<vmem>>, %arg4: memref<1x32xf32, #tpu.memory_space<vmem>>, %arg5: memref<2x8x32xf32, #tpu.memory_space<vmem>>) attributes {dimension_semantics = [#tpu.dimension_semantics<parallel>], iteration_bounds = array<i64: 1>, scalar_prefetch = 0 : i64, scratch_operands = 0 : i64, tpu.core_type = #tpu.core_type<tc>, window_params = [{transform_indices = @transform_0, window_bounds = array<i64: 2, 8, 32>}, {pipeline_mode = #tpu.pipeline_mode<synchronous>, transform_indices = @transform_1, window_bounds = array<i64: 12, 32, 8>}, {pipeline_mode = #tpu.pipeline_mode<synchronous>, transform_indices = @transform_2, window_bounds = array<i64: 4, 8, 32>}, {pipeline_mode = #tpu.pipeline_mode<synchronous>, transform_indices = @transform_3, window_bounds = array<i64: 1, 32>}, {transform_indices = @transform_4, window_bounds = array<i64: 2, 8, 32>}]} {
    %c0 = arith.constant 0 : index
    %c0_0 = arith.constant 0 : index
    %c0_1 = arith.constant 0 : index
    %0 = vector.load %arg1[%c0, %c0_0, %c0_1] : memref<2x8x32xf32, #tpu.memory_space<vmem>>, vector<2x8x32xf32>
    %1 = vector.shape_cast %0 : vector<2x8x32xf32> to vector<16x32xf32>
    %2 = arith.truncf %1 : vector<16x32xf32> to vector<16x32xbf16>
    %3 = vector.shape_cast %2 : vector<16x32xbf16> to vector<1x16x32xbf16>
    %4 = vector.shape_cast %3 : vector<1x16x32xbf16> to vector<1x16x32xbf16>
    %5 = vector.broadcast %4 : vector<1x16x32xbf16> to vector<12x16x32xbf16>
    %c0_2 = arith.constant 0 : index
    %c0_3 = arith.constant 0 : index
    %c0_4 = arith.constant 0 : index
    %6 = vector.load %arg2[%c0_2, %c0_3, %c0_4] : memref<12x32x8xbf16, #tpu.memory_space<vmem>>, vector<12x32x8xbf16>
    %cst = arith.constant dense<0.000000e+00> : vector<12x16x8xf32>
    %7 = tpu.matmul %5, %6, %cst {dimension_numbers = #tpu.dot_dimension_numbers<[2], [1], [1], [2], [0, 0, 0, 1, 1, 2], [0], [0]>} : vector<12x16x32xbf16>, vector<12x32x8xbf16>, vector<12x16x8xf32> -> vector<12x16x8xf32>
    %8 = vector.shape_cast %7 : vector<12x16x8xf32> to vector<24x8x8xf32>
    %9 = vector.extract_strided_slice %8 {offsets = [0, 0, 0], sizes = [8, 8, 8], strides = [1, 1, 1]} : vector<24x8x8xf32> to vector<8x8x8xf32>
    %10 = arith.truncf %9 : vector<8x8x8xf32> to vector<8x8x8xbf16>
    %11 = vector.extract_strided_slice %8 {offsets = [8, 0, 0], sizes = [8, 8, 8], strides = [1, 1, 1]} : vector<24x8x8xf32> to vector<8x8x8xf32>
    %12 = arith.truncf %11 : vector<8x8x8xf32> to vector<8x8x8xbf16>
    %13 = vector.extract_strided_slice %8 {offsets = [16, 0, 0], sizes = [8, 8, 8], strides = [1, 1, 1]} : vector<24x8x8xf32> to vector<8x8x8xf32>
    %14 = arith.truncf %13 : vector<8x8x8xf32> to vector<8x8x8xbf16>
    %cst_5 = arith.constant dense<0.000000e+00> : vector<8x8x8xf32>
    %15 = tpu.matmul %10, %12, %cst_5 {dimension_numbers = #tpu.dot_dimension_numbers<[2], [2], [1], [1], [0, 0, 0, 1, 1, 1], [0], [0]>} : vector<8x8x8xbf16>, vector<8x8x8xbf16>, vector<8x8x8xf32> -> vector<8x8x8xf32>
    %cst_6 = arith.constant dense<0xFF800000> : vector<8x8xf32>
    %16 = vector.multi_reduction <maximumf>, %15, %cst_6 [2] : vector<8x8x8xf32> to vector<8x8xf32>
    %17 = vector.shape_cast %16 : vector<8x8xf32> to vector<8x8x1xf32>
    %18 = vector.broadcast %17 : vector<8x8x1xf32> to vector<8x8x8xf32>
    %19 = arith.subf %15, %18 : vector<8x8x8xf32>
    %20 = math.exp %19 : vector<8x8x8xf32>
    %cst_7 = arith.constant dense<0.000000e+00> : vector<8x8xf32>
    %21 = vector.multi_reduction <add>, %20, %cst_7 [2] : vector<8x8x8xf32> to vector<8x8xf32>
    %22 = vector.shape_cast %21 : vector<8x8xf32> to vector<8x8x1xf32>
    %23 = arith.truncf %20 : vector<8x8x8xf32> to vector<8x8x8xbf16>
    %cst_8 = arith.constant dense<0.000000e+00> : vector<8x8x8xf32>
    %24 = tpu.matmul %23, %14, %cst_8 {dimension_numbers = #tpu.dot_dimension_numbers<[2], [1], [1], [2], [0, 0, 0, 1, 1, 2], [0], [0]>} : vector<8x8x8xbf16>, vector<8x8x8xbf16>, vector<8x8x8xf32> -> vector<8x8x8xf32>
    %25 = tpu.reciprocal %22 {approx = true} : vector<8x8x1xf32> -> vector<8x8x1xf32>
    %26 = vector.broadcast %25 : vector<8x8x1xf32> to vector<8x8x8xf32>
    %27 = arith.mulf %24, %26 : vector<8x8x8xf32>
    %28 = vector.shape_cast %27 : vector<8x8x8xf32> to vector<4x2x8x8xf32>
    %c0_9 = arith.constant 0 : index
    %c0_10 = arith.constant 0 : index
    %c0_11 = arith.constant 0 : index
    %29 = vector.load %arg3[%c0_9, %c0_10, %c0_11] : memref<4x8x32xbf16, #tpu.memory_space<vmem>>, vector<4x8x32xbf16>
    %30 = arith.truncf %28 : vector<4x2x8x8xf32> to vector<4x2x8x8xbf16>
    %cst_12 = arith.constant dense<0.000000e+00> : vector<4x2x8x32xf32>
    %31 = tpu.matmul %30, %29, %cst_12 {dimension_numbers = #tpu.dot_dimension_numbers<[3], [1], [1, 2], [2], [0, 0, 0, 1, 0, 2, 1, 2], [0], [0]>} : vector<4x2x8x8xbf16>, vector<4x8x32xbf16>, vector<4x2x8x32xf32> -> vector<4x2x8x32xf32>
    %cst_13 = arith.constant dense<0.000000e+00> : vector<2x8x32xf32>
    %32 = vector.multi_reduction <add>, %31, %cst_13 [0] : vector<4x2x8x32xf32> to vector<2x8x32xf32>
    %c0_14 = arith.constant 0 : index
    %c0_15 = arith.constant 0 : index
    %33 = vector.load %arg4[%c0_14, %c0_15] : memref<1x32xf32, #tpu.memory_space<vmem>>, vector<1x32xf32>
    %34 = vector.shape_cast %33 : vector<1x32xf32> to vector<1x1x32xf32>
    %35 = vector.broadcast %34 : vector<1x1x32xf32> to vector<2x8x32xf32>
    %36 = arith.addf %32, %35 : vector<2x8x32xf32>
    %c0_16 = arith.constant 0 : index
    %c0_17 = arith.constant 0 : index
    %c0_18 = arith.constant 0 : index
    %37 = vector.load %arg5[%c0_16, %c0_17, %c0_18] : memref<2x8x32xf32, #tpu.memory_space<vmem>>, vector<2x8x32xf32>
    tpu.vector_store %arg5[%c0_16, %c0_17, %c0_18], %36 {strides = array<i32>} : memref<2x8x32xf32, #tpu.memory_space<vmem>>, vector<2x8x32xf32>,
    return
  }
  func.func @transform_0(%arg0: i32) -> (i32, i32, i32) {
    %c0_i32 = arith.constant 0 : i32
    %c0_i32_0 = arith.constant 0 : i32
    %c0_i32_1 = arith.constant 0 : i32
    return %arg0, %c0_i32, %c0_i32_0 : i32, i32, i32
  }
  func.func @transform_1(%arg0: i32) -> (i32, i32, i32) {
    %c0_i32 = arith.constant 0 : i32
    %c0_i32_0 = arith.constant 0 : i32
    %c0_i32_1 = arith.constant 0 : i32
    %c0_i32_2 = arith.constant 0 : i32
    return %c0_i32, %c0_i32_0, %c0_i32_1 : i32, i32, i32
  }
  func.func @transform_2(%arg0: i32) -> (i32, i32, i32) {
    %c0_i32 = arith.constant 0 : i32
    %c0_i32_0 = arith.constant 0 : i32
    %c0_i32_1 = arith.constant 0 : i32
    %c0_i32_2 = arith.constant 0 : i32
    return %c0_i32, %c0_i32_0, %c0_i32_1 : i32, i32, i32
  }
  func.func @transform_3(%arg0: i32) -> (i32, i32) {
    %c0_i32 = arith.constant 0 : i32
    %c0_i32_0 = arith.constant 0 : i32
    %c0_i32_1 = arith.constant 0 : i32
    return %c0_i32, %c0_i32_0 : i32, i32
  }
  func.func @transform_4(%arg0: i32) -> (i32, i32, i32) {
    %c0_i32 = arith.constant 0 : i32
    %c0_i32_0 = arith.constant 0 : i32
    %c0_i32_1 = arith.constant 0 : i32
    return %arg0, %c0_i32, %c0_i32_0 : i32, i32, i32
  }
}

</mosaic_0001>

<llo_original>
// kernel: tpu_custom_call.1
$region0: #{tpu_custom_call.1}
  #allocation0 [shape = 'u32[]', space=smem, size = 0x4, offset = 0x4, fixed_abs, tag = 'smem constant byte address 0x4 - core index']
  #allocation1 [shape = 'u32[144,128]{1,0:T(1,128)}', space=vmem, size = 0x12000, scoped, tag = 'internal scratch']
  %s0 = inlined_call_operand.vmem [shape: f32[2,8,32], index: 0, kind: input, shape index: {}]
  %s1 = inlined_call_operand.vmem [shape: bf16[12,32,8], index: 1, kind: input, shape index: {}]
  %s2 = inlined_call_operand.vmem [shape: bf16[4,8,32], index: 2, kind: input, shape index: {}]
  %s3 = inlined_call_operand.vmem [shape: f32[1,32], index: 3, kind: input, shape index: {}]
  %s4 = inlined_call_operand.hbm [shape: f32[2,8,32], index: 4, kind: output, shape index: {}]
  %s5 = sld [smem:[#allocation0]]
  $region26: #{tpu_custom_call.1} parent=0
    _
  %s7 = ssub.s32 1, %s5
  %s8 = scalar_select 0, %s7, %s5
  $region1: #{tpu_custom_call.1} parent=0
    #allocation2 [shape = 'u8[8192]{0}', space=vmem, size = 0x2000, scoped, tag = 'output window, operand 0, single buffered']
    #allocation3 [shape = 's32[1]{0}', space=sflag, size = 0x4, scoped, tag = 'scoped memory for tpu_custom_call.1']
    %9 = vsyncpa [#allocation3], 0
    // Predicated region
    $region2: #{tpu_custom_call.1} parent=1 // pred_check
      _
    $region3: #{tpu_custom_call.1} parent=1 // pred_check_branch
      %11 = sbr.rel (0) target = $region5
    $region4: #{tpu_custom_call.1} parent=1 // pred_region
      _
    $region5: #{tpu_custom_call.1} parent=1 // pred_fallthru
      _
    // Predicated region
    $region6: #{tpu_custom_call.1} parent=1 // pred_check
      _
    $region7: #{tpu_custom_call.1} parent=1 // pred_check_branch
      %13 = sbr.rel (0) target = $region9
    $region8: #{tpu_custom_call.1} parent=1 // pred_region
      _
    $region9: #{tpu_custom_call.1} parent=1 // pred_fallthru
      _
    // Predicated region
    $region10: #{tpu_custom_call.1} parent=1 // pred_check
      _
    $region11: #{tpu_custom_call.1} parent=1 // pred_check_branch
      %15 = sbr.rel (0) target = $region13
    $region12: #{tpu_custom_call.1} parent=1 // pred_region
      _
    $region13: #{tpu_custom_call.1} parent=1 // pred_fallthru
      _
    // Predicated region
    $region14: #{tpu_custom_call.1} parent=1 // pred_check
      _
    $region15: #{tpu_custom_call.1} parent=1 // pred_check_branch
      %17 = sbr.rel (0) target = $region17
    $region16: #{tpu_custom_call.1} parent=1 // pred_region
      _
    $region17: #{tpu_custom_call.1} parent=1 // pred_fallthru
      _
    %v19 = vld [vmem:[%s0] sm:$0xff]
    %v20 = vld [vmem:[%s0 + $0x8] sm:$0xff]
    %v21 = vpack.c.bf16 %v20, %v19
    %v22 = vld [vmem:[%s1] sm:$0xf]
    %v23 = vld [vmem:[%s1 + $0x4] sm:$0xf]
    %v24 = vld [vmem:[%s1 + $0x8] sm:$0xf]
    %v25 = vld [vmem:[%s1 + $0xc] sm:$0xf]
    %v26 = vld [vmem:[%s1 + $0x10] sm:$0xf]
    %v27 = vld [vmem:[%s1 + $0x14] sm:$0xf]
    %v28 = vld [vmem:[%s1 + $0x18] sm:$0xf]
    %v29 = vld [vmem:[%s1 + $0x1c] sm:$0xf]
    %v30 = vld [vmem:[%s1 + $0x20] sm:$0xf]
    %v31 = vld [vmem:[%s1 + $0x24] sm:$0xf]
    %v32 = vld [vmem:[%s1 + $0x28] sm:$0xf]
    %v33 = vld [vmem:[%s1 + $0x2c] sm:$0xf]
    %v34 = vld [vmem:[%s1 + $0x30] sm:$0xf]
    %v35 = vld [vmem:[%s1 + $0x34] sm:$0xf]
    %v36 = vld [vmem:[%s1 + $0x38] sm:$0xf]
    %v37 = vld [vmem:[%s1 + $0x3c] sm:$0xf]
    %v38 = vld [vmem:[%s1 + $0x40] sm:$0xf]
    %v39 = vld [vmem:[%s1 + $0x44] sm:$0xf]
    %v40 = vld [vmem:[%s1 + $0x48] sm:$0xf]
    %v41 = vld [vmem:[%s1 + $0x4c] sm:$0xf]
    %v42 = vld [vmem:[%s1 + $0x50] sm:$0xf]
    %v43 = vld [vmem:[%s1 + $0x54] sm:$0xf]
    %v44 = vld [vmem:[%s1 + $0x58] sm:$0xf]
    %v45 = vld [vmem:[%s1 + $0x5c] sm:$0xf]
    %v46 = vld [vmem:[%s1 + $0x60] sm:$0xf]
    %v47 = vld [vmem:[%s1 + $0x64] sm:$0xf]
    %v48 = vld [vmem:[%s1 + $0x68] sm:$0xf]
    %v49 = vld [vmem:[%s1 + $0x6c] sm:$0xf]
    %v50 = vld [vmem:[%s1 + $0x70] sm:$0xf]
    %v51 = vld [vmem:[%s1 + $0x74] sm:$0xf]
    %v52 = vld [vmem:[%s1 + $0x78] sm:$0xf]
    %v53 = vld [vmem:[%s1 + $0x7c] sm:$0xf]
    %v54 = vld [vmem:[%s1 + $0x80] sm:$0xf]
    %v55 = vld [vmem:[%s1 + $0x84] sm:$0xf]
    %v56 = vld [vmem:[%s1 + $0x88] sm:$0xf]
    %v57 = vld [vmem:[%s1 + $0x8c] sm:$0xf]
    %v58 = vld [vmem:[%s1 + $0x90] sm:$0xf]
    %v59 = vld [vmem:[%s1 + $0x94] sm:$0xf]
    %v60 = vld [vmem:[%s1 + $0x98] sm:$0xf]
    %v61 = vld [vmem:[%s1 + $0x9c] sm:$0xf]
    %v62 = vld [vmem:[%s1 + $0xa0] sm:$0xf]
    %v63 = vld [vmem:[%s1 + $0xa4] sm:$0xf]
    %v64 = vld [vmem:[%s1 + $0xa8] sm:$0xf]
    %v65 = vld [vmem:[%s1 + $0xac] sm:$0xf]
    %v66 = vld [vmem:[%s1 + $0xb0] sm:$0xf]
    %v67 = vld [vmem:[%s1 + $0xb4] sm:$0xf]
    %v68 = vld [vmem:[%s1 + $0xb8] sm:$0xf]
    %v69 = vld [vmem:[%s1 + $0xbc] sm:$0xf]
    %v74 = vunpack.c.l.b16 %v22
    %v75 = vunpack.c.l.b16 %v23
    %v76 = vunpack.c.l.b16 %v24
    %v77 = vunpack.c.l.b16 %v25
    %v78 = vpack.c.b16 %v75, %v74
    %v79 = vpack.c.b16 %v77, %v76
    %vm82 = vcmask 261120
    %v84 = vsel %vm82, %v21, 0
    %86 = vmatprep.subr.bf16.mxu0 0
    %87 = vmatpush1.bf16.msra.mxu0 %v78
    %88 = vmatprep.subr.bf16.mxu0 0
    %89 = vmatpush1.bf16.msra.mxu0 %v79
    %90 = vmatprep.subr.bf16.mxu0 0
    %91 = vmatpush1.bf16.msra.mxu0 0
    %92 = vmatprep.subr.bf16.mxu0 0
    %93 = vmatpush1.bf16.msra.mxu0 0
    %94 = vmatprep.subr.bf16.mxu0 0
    %95 = vmatpush1.bf16.msra.mxu0 0
    %96 = vmatprep.subr.bf16.mxu0 0
    %97 = vmatpush1.bf16.msra.mxu0 0
    %98 = vmatprep.subr.bf16.mxu0 0
    %99 = vmatpush1.bf16.msra.mxu0 0
    %100 = vmatprep.subr.bf16.mxu0 0
    %101 = vmatpush1.bf16.msra.mxu0 0
    %102 = vmatprep.subr.bf16.mxu0 0
    %103 = vmatpush1.bf16.msra.mxu0 0
    %104 = vmatprep.subr.bf16.mxu0 0
    %105 = vmatpush1.bf16.msra.mxu0 0
    %106 = vmatprep.subr.bf16.mxu0 0
    %107 = vmatpush1.bf16.msra.mxu0 0
    %108 = vmatprep.subr.bf16.mxu0 0
    %109 = vmatpush1.bf16.msra.mxu0 0
    %110 = vmatprep.subr.bf16.mxu0 0
    %111 = vmatpush1.bf16.msra.mxu0 0
    %112 = vmatprep.subr.bf16.mxu0 0
    %113 = vmatpush1.bf16.msra.mxu0 0
    %114 = vmatprep.subr.bf16.mxu0 0
    %115 = vmatpush1.bf16.msra.mxu0 0
    %116 = vmatprep.subr.bf16.mxu0 0
    %117 = vmatpush1.bf16.msra.mxu0 0
    %118 = vmatprep.mubr.bf16.mxu0 0
    %119 = vmatmul.mubr.bf16.gmra.mrb[0].mxu0 %v84
    %v120 = vpop.f32.mrb[0].mxu0
    %v121 = vadd.f32 0.0, %v120
    %v122 = vpop.f32.mrb[0].mxu0
    %v123 = vpop.f32.mrb[0].mxu0
    %v124 = vadd.f32 0.0, %v123
    %v125 = vpop.f32.mrb[0].mxu0
    %126 = vdwg.mxu0
    %v131 = vunpack.c.l.b16 %v26
    %v132 = vunpack.c.l.b16 %v27
    %v133 = vunpack.c.l.b16 %v28
    %v134 = vunpack.c.l.b16 %v29
    %v135 = vpack.c.b16 %v132, %v131
    %v136 = vpack.c.b16 %v134, %v133
    %139 = vmatprep.subr.bf16.mxu0 0
    %140 = vmatpush1.bf16.msra.mxu0 %v135
    %141 = vmatprep.subr.bf16.mxu0 0
    %142 = vmatpush1.bf16.msra.mxu0 %v136
    %143 = vmatprep.subr.bf16.mxu0 0
    %144 = vmatpush1.bf16.msra.mxu0 0
    %145 = vmatprep.subr.bf16.mxu0 0
    %146 = vmatpush1.bf16.msra.mxu0 0
    %147 = vmatprep.subr.bf16.mxu0 0
    %148 = vmatpush1.bf16.msra.mxu0 0
    %149 = vmatprep.subr.bf16.mxu0 0
    %150 = vmatpush1.bf16.msra.mxu0 0
    %151 = vmatprep.subr.bf16.mxu0 0
    %152 = vmatpush1.bf16.msra.mxu0 0
    %153 = vmatprep.subr.bf16.mxu0 0
    %154 = vmatpush1.bf16.msra.mxu0 0
    %155 = vmatprep.subr.bf16.mxu0 0
    %156 = vmatpush1.bf16.msra.mxu0 0
    %157 = vmatprep.subr.bf16.mxu0 0
    %158 = vmatpush1.bf16.msra.mxu0 0
    %159 = vmatprep.subr.bf16.mxu0 0
    %160 = vmatpush1.bf16.msra.mxu0 0
    %161 = vmatprep.subr.bf16.mxu0 0
    %162 = vmatpush1.bf16.msra.mxu0 0
    %163 = vmatprep.subr.bf16.mxu0 0
    %164 = vmatpush1.bf16.msra.mxu0 0
    %165 = vmatprep.subr.bf16.mxu0 0
    %166 = vmatpush1.bf16.msra.mxu0 0
    %167 = vmatprep.subr.bf16.mxu0 0
    %168 = vmatpush1.bf16.msra.mxu0 0
    %169 = vmatprep.subr.bf16.mxu0 0
    %170 = vmatpush1.bf16.msra.mxu0 0
    %171 = vmatprep.mubr.bf16.mxu0 0
    %172 = vmatmul.mubr.bf16.gmra.mrb[0].mxu0 %v84
    %v173 = vpop.f32.mrb[0].mxu0
    %v174 = vadd.f32 0.0, %v173
    %v175 = vpop.f32.mrb[0].mxu0
    %v176 = vpop.f32.mrb[0].mxu0
    %v177 = vadd.f32 0.0, %v176
    %v178 = vpop.f32.mrb[0].mxu0
    %179 = vdwg.mxu0
    %v184 = vunpack.c.l.b16 %v30
    %v185 = vunpack.c.l.b16 %v31
    %v186 = vunpack.c.l.b16 %v32
    %v187 = vunpack.c.l.b16 %v33
    %v188 = vpack.c.b16 %v185, %v184
    %v189 = vpack.c.b16 %v187, %v186
    %192 = vmatprep.subr.bf16.mxu0 0
    %193 = vmatpush1.bf16.msra.mxu0 %v188
    %194 = vmatprep.subr.bf16.mxu0 0
    %195 = vmatpush1.bf16.msra.mxu0 %v189
    %196 = vmatprep.subr.bf16.mxu0 0
    %197 = vmatpush1.bf16.msra.mxu0 0
    %198 = vmatprep.subr.bf16.mxu0 0
    %199 = vmatpush1.bf16.msra.mxu0 0
    %200 = vmatprep.subr.bf16.mxu0 0
    %201 = vmatpush1.bf16.msra.mxu0 0
    %202 = vmatprep.subr.bf16.mxu0 0
    %203 = vmatpush1.bf16.msra.mxu0 0
    %204 = vmatprep.subr.bf16.mxu0 0
    %205 = vmatpush1.bf16.msra.mxu0 0
    %206 = vmatprep.subr.bf16.mxu0 0
    %207 = vmatpush1.bf16.msra.mxu0 0
    %208 = vmatprep.subr.bf16.mxu0 0
    %209 = vmatpush1.bf16.msra.mxu0 0
    %210 = vmatprep.subr.bf16.mxu0 0
    %211 = vmatpush1.bf16.msra.mxu0 0
    %212 = vmatprep.subr.bf16.mxu0 0
    %213 = vmatpush1.bf16.msra.mxu0 0
    %214 = vmatprep.subr.bf16.mxu0 0
    %215 = vmatpush1.bf16.msra.mxu0 0
    %216 = vmatprep.subr.bf16.mxu0 0
    %217 = vmatpush1.bf16.msra.mxu0 0
    %218 = vmatprep.subr.bf16.mxu0 0
    %219 = vmatpush1.bf16.msra.mxu0 0
    %220 = vmatprep.subr.bf16.mxu0 0
    %221 = vmatpush1.bf16.msra.mxu0 0
    %222 = vmatprep.subr.bf16.mxu0 0
    %223 = vmatpush1.bf16.msra.mxu0 0
    %224 = vmatprep.mubr.bf16.mxu0 0
    %225 = vmatmul.mubr.bf16.gmra.mrb[0].mxu0 %v84
    %v226 = vpop.f32.mrb[0].mxu0
    %v227 = vadd.f32 0.0, %v226
    %v228 = vpop.f32.mrb[0].mxu0
    %v229 = vpop.f32.mrb[0].mxu0
    %v230 = vadd.f32 0.0, %v229
    %v231 = vpop.f32.mrb[0].mxu0
    %232 = vdwg.mxu0
    %v237 = vunpack.c.l.b16 %v34
    %v238 = vunpack.c.l.b16 %v35
    %v239 = vunpack.c.l.b16 %v36
    %v240 = vunpack.c.l.b16 %v37
    %v241 = vpack.c.b16 %v238, %v237
    %v242 = vpack.c.b16 %v240, %v239
    %245 = vmatprep.subr.bf16.mxu0 0
    %246 = vmatpush1.bf16.msra.mxu0 %v241
    %247 = vmatprep.subr.bf16.mxu0 0
    %248 = vmatpush1.bf16.msra.mxu0 %v242
    %249 = vmatprep.subr.bf16.mxu0 0
    %250 = vmatpush1.bf16.msra.mxu0 0
    %251 = vmatprep.subr.bf16.mxu0 0
    %252 = vmatpush1.bf16.msra.mxu0 0
    %253 = vmatprep.subr.bf16.mxu0 0
    %254 = vmatpush1.bf16.msra.mxu0 0
    %255 = vmatprep.subr.bf16.mxu0 0
    %256 = vmatpush1.bf16.msra.mxu0 0
    %257 = vmatprep.subr.bf16.mxu0 0
    %258 = vmatpush1.bf16.msra.mxu0 0
    %259 = vmatprep.subr.bf16.mxu0 0
    %260 = vmatpush1.bf16.msra.mxu0 0
    %261 = vmatprep.subr.bf16.mxu0 0
    %262 = vmatpush1.bf16.msra.mxu0 0
    %263 = vmatprep.subr.bf16.mxu0 0
    %264 = vmatpush1.bf16.msra.mxu0 0
    %265 = vmatprep.subr.bf16.mxu0 0
    %266 = vmatpush1.bf16.msra.mxu0 0
    %267 = vmatprep.subr.bf16.mxu0 0
    %268 = vmatpush1.bf16.msra.mxu0 0
    %269 = vmatprep.subr.bf16.mxu0 0
    %270 = vmatpush1.bf16.msra.mxu0 0
    %271 = vmatprep.subr.bf16.mxu0 0
    %272 = vmatpush1.bf16.msra.mxu0 0
    %273 = vmatprep.subr.bf16.mxu0 0
    %274 = vmatpush1.bf16.msra.mxu0 0
    %275 = vmatprep.subr.bf16.mxu0 0
    %276 = vmatpush1.bf16.msra.mxu0 0
    %277 = vmatprep.mubr.bf16.mxu0 0
    %278 = vmatmul.mubr.bf16.gmra.mrb[0].mxu0 %v84
    %v279 = vpop.f32.mrb[0].mxu0
    %v280 = vadd.f32 0.0, %v279
    %v281 = vpop.f32.mrb[0].mxu0
    %v282 = vpop.f32.mrb[0].mxu0
    %v283 = vadd.f32 0.0, %v282
    %v284 = vpop.f32.mrb[0].mxu0
    %285 = vdwg.mxu0
    %v290 = vunpack.c.l.b16 %v38
    %v291 = vunpack.c.l.b16 %v39
    %v292 = vunpack.c.l.b16 %v40
    %v293 = vunpack.c.l.b16 %v41
    %v294 = vpack.c.b16 %v291, %v290
    %v295 = vpack.c.b16 %v293, %v292
    %298 = vmatprep.subr.bf16.mxu0 0
    %299 = vmatpush1.bf16.msra.mxu0 %v294
    %300 = vmatprep.subr.bf16.mxu0 0
    %301 = vmatpush1.bf16.msra.mxu0 %v295
    %302 = vmatprep.subr.bf16.mxu0 0
    %303 = vmatpush1.bf16.msra.mxu0 0
    %304 = vmatprep.subr.bf16.mxu0 0
    %305 = vmatpush1.bf16.msra.mxu0 0
    %306 = vmatprep.subr.bf16.mxu0 0
    %307 = vmatpush1.bf16.msra.mxu0 0
    %308 = vmatprep.subr.bf16.mxu0 0
    %309 = vmatpush1.bf16.msra.mxu0 0
    %310 = vmatprep.subr.bf16.mxu0 0
    %311 = vmatpush1.bf16.msra.mxu0 0
    %312 = vmatprep.subr.bf16.mxu0 0
    %313 = vmatpush1.bf16.msra.mxu0 0
    %314 = vmatprep.subr.bf16.mxu0 0
    %315 = vmatpush1.bf16.msra.mxu0 0
    %316 = vmatprep.subr.bf16.mxu0 0
    %317 = vmatpush1.bf16.msra.mxu0 0
    %318 = vmatprep.subr.bf16.mxu0 0
    %319 = vmatpush1.bf16.msra.mxu0 0
    %320 = vmatprep.subr.bf16.mxu0 0
    %321 = vmatpush1.bf16.msra.mxu0 0
    %322 = vmatprep.subr.bf16.mxu0 0
    %323 = vmatpush1.bf16.msra.mxu0 0
    %324 = vmatprep.subr.bf16.mxu0 0
    %325 = vmatpush1.bf16.msra.mxu0 0
    %326 = vmatprep.subr.bf16.mxu0 0
    %327 = vmatpush1.bf16.msra.mxu0 0
    %328 = vmatprep.subr.bf16.mxu0 0
    %329 = vmatpush1.bf16.msra.mxu0 0
    %330 = vmatprep.mubr.bf16.mxu0 0
    %331 = vmatmul.mubr.bf16.gmra.mrb[0].mxu0 %v84
    %v332 = vpop.f32.mrb[0].mxu0
    %v333 = vadd.f32 0.0, %v332
    %v334 = vpop.f32.mrb[0].mxu0
    %v335 = vpop.f32.mrb[0].mxu0
    %v336 = vadd.f32 0.0, %v335
    %v337 = vpop.f32.mrb[0].mxu0
    %338 = vdwg.mxu0
    %v343 = vunpack.c.l.b16 %v42
    %v344 = vunpack.c.l.b16 %v43
    %v345 = vunpack.c.l.b16 %v44
    %v346 = vunpack.c.l.b16 %v45
    %v347 = vpack.c.b16 %v344, %v343
    %v348 = vpack.c.b16 %v346, %v345
    %351 = vmatprep.subr.bf16.mxu0 0
    %352 = vmatpush1.bf16.msra.mxu0 %v347
    %353 = vmatprep.subr.bf16.mxu0 0
    %354 = vmatpush1.bf16.msra.mxu0 %v348
    %355 = vmatprep.subr.bf16.mxu0 0
    %356 = vmatpush1.bf16.msra.mxu0 0
    %357 = vmatprep.subr.bf16.mxu0 0
    %358 = vmatpush1.bf16.msra.mxu0 0
    %359 = vmatprep.subr.bf16.mxu0 0
    %360 = vmatpush1.bf16.msra.mxu0 0
    %361 = vmatprep.subr.bf16.mxu0 0
    %362 = vmatpush1.bf16.msra.mxu0 0
    %363 = vmatprep.subr.bf16.mxu0 0
    %364 = vmatpush1.bf16.msra.mxu0 0
    %365 = vmatprep.subr.bf16.mxu0 0
    %366 = vmatpush1.bf16.msra.mxu0 0
    %367 = vmatprep.subr.bf16.mxu0 0
    %368 = vmatpush1.bf16.msra.mxu0 0
    %369 = vmatprep.subr.bf16.mxu0 0
    %370 = vmatpush1.bf16.msra.mxu0 0
    %371 = vmatprep.subr.bf16.mxu0 0
    %372 = vmatpush1.bf16.msra.mxu0 0
    %373 = vmatprep.subr.bf16.mxu0 0
    %374 = vmatpush1.bf16.msra.mxu0 0
    %375 = vmatprep.subr.bf16.mxu0 0
    %376 = vmatpush1.bf16.msra.mxu0 0
    %377 = vmatprep.subr.bf16.mxu0 0
    %378 = vmatpush1.bf16.msra.mxu0 0
    %379 = vmatprep.subr.bf16.mxu0 0
    %380 = vmatpush1.bf16.msra.mxu0 0
    %381 = vmatprep.subr.bf16.mxu0 0
    %382 = vmatpush1.bf16.msra.mxu0 0
    %383 = vmatprep.mubr.bf16.mxu0 0
    %384 = vmatmul.mubr.bf16.gmra.mrb[0].mxu0 %v84
    %v385 = vpop.f32.mrb[0].mxu0
    %v386 = vadd.f32 0.0, %v385
    %v387 = vpop.f32.mrb[0].mxu0
    %v388 = vpop.f32.mrb[0].mxu0
    %v389 = vadd.f32 0.0, %v388
    %v390 = vpop.f32.mrb[0].mxu0
    %391 = vdwg.mxu0
    %v396 = vunpack.c.l.b16 %v46
    %v397 = vunpack.c.l.b16 %v47
    %v398 = vunpack.c.l.b16 %v48
    %v399 = vunpack.c.l.b16 %v49
    %v400 = vpack.c.b16 %v397, %v396
    %v401 = vpack.c.b16 %v399, %v398
    %404 = vmatprep.subr.bf16.mxu0 0
    %405 = vmatpush1.bf16.msra.mxu0 %v400
    %406 = vmatprep.subr.bf16.mxu0 0
    %407 = vmatpush1.bf16.msra.mxu0 %v401
    %408 = vmatprep.subr.bf16.mxu0 0
    %409 = vmatpush1.bf16.msra.mxu0 0
    %410 = vmatprep.subr.bf16.mxu0 0
    %411 = vmatpush1.bf16.msra.mxu0 0
    %412 = vmatprep.subr.bf16.mxu0 0
    %413 = vmatpush1.bf16.msra.mxu0 0
    %414 = vmatprep.subr.bf16.mxu0 0
    %415 = vmatpush1.bf16.msra.mxu0 0
    %416 = vmatprep.subr.bf16.mxu0 0
    %417 = vmatpush1.bf16.msra.mxu0 0
    %418 = vmatprep.subr.bf16.mxu0 0
    %419 = vmatpush1.bf16.msra.mxu0 0
    %420 = vmatprep.subr.bf16.mxu0 0
    %421 = vmatpush1.bf16.msra.mxu0 0
    %422 = vmatprep.subr.bf16.mxu0 0
    %423 = vmatpush1.bf16.msra.mxu0 0
    %424 = vmatprep.subr.bf16.mxu0 0
    %425 = vmatpush1.bf16.msra.mxu0 0
    %426 = vmatprep.subr.bf16.mxu0 0
    %427 = vmatpush1.bf16.msra.mxu0 0
    %428 = vmatprep.subr.bf16.mxu0 0
    %429 = vmatpush1.bf16.msra.mxu0 0
    %430 = vmatprep.subr.bf16.mxu0 0
    %431 = vmatpush1.bf16.msra.mxu0 0
    %432 = vmatprep.subr.bf16.mxu0 0
    %433 = vmatpush1.bf16.msra.mxu0 0
    %434 = vmatprep.subr.bf16.mxu0 0
    %435 = vmatpush1.bf16.msra.mxu0 0
    %436 = vmatprep.mubr.bf16.mxu0 0
    %437 = vmatmul.mubr.bf16.gmra.mrb[0].mxu0 %v84
    %v438 = vpop.f32.mrb[0].mxu0
    %v439 = vadd.f32 0.0, %v438
    %v440 = vpop.f32.mrb[0].mxu0
    %v441 = vpop.f32.mrb[0].mxu0
    %v442 = vadd.f32 0.0, %v441
    %v443 = vpop.f32.mrb[0].mxu0
    %444 = vdwg.mxu0
    %v449 = vunpack.c.l.b16 %v50
    %v450 = vunpack.c.l.b16 %v51
    %v451 = vunpack.c.l.b16 %v52
    %v452 = vunpack.c.l.b16 %v53
    %v453 = vpack.c.b16 %v450, %v449
    %v454 = vpack.c.b16 %v452, %v451
    %457 = vmatprep.subr.bf16.mxu0 0
    %458 = vmatpush1.bf16.msra.mxu0 %v453
    %459 = vmatprep.subr.bf16.mxu0 0
    %460 = vmatpush1.bf16.msra.mxu0 %v454
    %461 = vmatprep.subr.bf16.mxu0 0
    %462 = vmatpush1.bf16.msra.mxu0 0
    %463 = vmatprep.subr.bf16.mxu0 0
    %464 = vmatpush1.bf16.msra.mxu0 0
    %465 = vmatprep.subr.bf16.mxu0 0
    %466 = vmatpush1.bf16.msra.mxu0 0
    %467 = vmatprep.subr.bf16.mxu0 0
    %468 = vmatpush1.bf16.msra.mxu0 0
    %469 = vmatprep.subr.bf16.mxu0 0
    %470 = vmatpush1.bf16.msra.mxu0 0
    %471 = vmatprep.subr.bf16.mxu0 0
    %472 = vmatpush1.bf16.msra.mxu0 0
    %473 = vmatprep.subr.bf16.mxu0 0
    %474 = vmatpush1.bf16.msra.mxu0 0
    %475 = vmatprep.subr.bf16.mxu0 0
    %476 = vmatpush1.bf16.msra.mxu0 0
    %477 = vmatprep.subr.bf16.mxu0 0
    %478 = vmatpush1.bf16.msra.mxu0 0
    %479 = vmatprep.subr.bf16.mxu0 0
    %480 = vmatpush1.bf16.msra.mxu0 0
    %481 = vmatprep.subr.bf16.mxu0 0
    %482 = vmatpush1.bf16.msra.mxu0 0
    %483 = vmatprep.subr.bf16.mxu0 0
    %484 = vmatpush1.bf16.msra.mxu0 0
    %485 = vmatprep.subr.bf16.mxu0 0
    %486 = vmatpush1.bf16.msra.mxu0 0
    %487 = vmatprep.subr.bf16.mxu0 0
    %488 = vmatpush1.bf16.msra.mxu0 0
    %489 = vmatprep.mubr.bf16.mxu0 0
    %490 = vmatmul.mubr.bf16.gmra.mrb[0].mxu0 %v84
    %v491 = vpop.f32.mrb[0].mxu0
    %v492 = vadd.f32 0.0, %v491
    %v493 = vpop.f32.mrb[0].mxu0
    %v494 = vpop.f32.mrb[0].mxu0
    %v495 = vadd.f32 0.0, %v494
    %v496 = vpop.f32.mrb[0].mxu0
    %497 = vdwg.mxu0
    %v502 = vunpack.c.l.b16 %v54
    %v503 = vunpack.c.l.b16 %v55
    %v504 = vunpack.c.l.b16 %v56
    %v505 = vunpack.c.l.b16 %v57
    %v506 = vpack.c.b16 %v503, %v502
    %v507 = vpack.c.b16 %v505, %v504
    %510 = vmatprep.subr.bf16.mxu0 0
    %511 = vmatpush1.bf16.msra.mxu0 %v506
    %512 = vmatprep.subr.bf16.mxu0 0
    %513 = vmatpush1.bf16.msra.mxu0 %v507
    %514 = vmatprep.subr.bf16.mxu0 0
    %515 = vmatpush1.bf16.msra.mxu0 0
    %516 = vmatprep.subr.bf16.mxu0 0
    %517 = vmatpush1.bf16.msra.mxu0 0
    %518 = vmatprep.subr.bf16.mxu0 0
    %519 = vmatpush1.bf16.msra.mxu0 0
    %520 = vmatprep.subr.bf16.mxu0 0
    %521 = vmatpush1.bf16.msra.mxu0 0
    %522 = vmatprep.subr.bf16.mxu0 0
    %523 = vmatpush1.bf16.msra.mxu0 0
    %524 = vmatprep.subr.bf16.mxu0 0
    %525 = vmatpush1.bf16.msra.mxu0 0
    %526 = vmatprep.subr.bf16.mxu0 0
    %527 = vmatpush1.bf16.msra.mxu0 0
    %528 = vmatprep.subr.bf16.mxu0 0
    %529 = vmatpush1.bf16.msra.mxu0 0
    %530 = vmatprep.subr.bf16.mxu0 0
    %531 = vmatpush1.bf16.msra.mxu0 0
    %532 = vmatprep.subr.bf16.mxu0 0
    %533 = vmatpush1.bf16.msra.mxu0 0
    %534 = vmatprep.subr.bf16.mxu0 0
    %535 = vmatpush1.bf16.msra.mxu0 0
    %536 = vmatprep.subr.bf16.mxu0 0
    %537 = vmatpush1.bf16.msra.mxu0 0
    %538 = vmatprep.subr.bf16.mxu0 0
    %539 = vmatpush1.bf16.msra.mxu0 0
    %540 = vmatprep.subr.bf16.mxu0 0
    %541 = vmatpush1.bf16.msra.mxu0 0
    %542 = vmatprep.mubr.bf16.mxu0 0
    %543 = vmatmul.mubr.bf16.gmra.mrb[0].mxu0 %v84
    %v544 = vpop.f32.mrb[0].mxu0
    %v545 = vadd.f32 0.0, %v544
    %v546 = vpop.f32.mrb[0].mxu0
    %v547 = vpop.f32.mrb[0].mxu0
    %v548 = vadd.f32 0.0, %v547
    %v549 = vpop.f32.mrb[0].mxu0
    %550 = vdwg.mxu0
    %v555 = vunpack.c.l.b16 %v58
    %v556 = vunpack.c.l.b16 %v59
    %v557 = vunpack.c.l.b16 %v60
    %v558 = vunpack.c.l.b16 %v61
    %v559 = vpack.c.b16 %v556, %v555
    %v560 = vpack.c.b16 %v558, %v557
    %563 = vmatprep.subr.bf16.mxu0 0
    %564 = vmatpush1.bf16.msra.mxu0 %v559
    %565 = vmatprep.subr.bf16.mxu0 0
    %566 = vmatpush1.bf16.msra.mxu0 %v560
    %567 = vmatprep.subr.bf16.mxu0 0
    %568 = vmatpush1.bf16.msra.mxu0 0
    %569 = vmatprep.subr.bf16.mxu0 0
    %570 = vmatpush1.bf16.msra.mxu0 0
    %571 = vmatprep.subr.bf16.mxu0 0
    %572 = vmatpush1.bf16.msra.mxu0 0
    %573 = vmatprep.subr.bf16.mxu0 0
    %574 = vmatpush1.bf16.msra.mxu0 0
    %575 = vmatprep.subr.bf16.mxu0 0
    %576 = vmatpush1.bf16.msra.mxu0 0
    %577 = vmatprep.subr.bf16.mxu0 0
    %578 = vmatpush1.bf16.msra.mxu0 0
    %579 = vmatprep.subr.bf16.mxu0 0
    %580 = vmatpush1.bf16.msra.mxu0 0
    %581 = vmatprep.subr.bf16.mxu0 0
    %582 = vmatpush1.bf16.msra.mxu0 0
    %583 = vmatprep.subr.bf16.mxu0 0
    %584 = vmatpush1.bf16.msra.mxu0 0
    %585 = vmatprep.subr.bf16.mxu0 0
    %586 = vmatpush1.bf16.msra.mxu0 0
    %587 = vmatprep.subr.bf16.mxu0 0
    %588 = vmatpush1.bf16.msra.mxu0 0
    %589 = vmatprep.subr.bf16.mxu0 0
    %590 = vmatpush1.bf16.msra.mxu0 0
    %591 = vmatprep.subr.bf16.mxu0 0
    %592 = vmatpush1.bf16.msra.mxu0 0
    %593 = vmatprep.subr.bf16.mxu0 0
    %594 = vmatpush1.bf16.msra.mxu0 0
    %595 = vmatprep.mubr.bf16.mxu0 0
    %596 = vmatmul.mubr.bf16.gmra.mrb[0].mxu0 %v84
    %v597 = vpop.f32.mrb[0].mxu0
    %v598 = vadd.f32 0.0, %v597
    %v599 = vpop.f32.mrb[0].mxu0
    %v600 = vpop.f32.mrb[0].mxu0
    %v601 = vadd.f32 0.0, %v600
    %v602 = vpop.f32.mrb[0].mxu0
    %603 = vdwg.mxu0
    %v608 = vunpack.c.l.b16 %v62
    %v609 = vunpack.c.l.b16 %v63
    %v610 = vunpack.c.l.b16 %v64
    %v611 = vunpack.c.l.b16 %v65
    %v612 = vpack.c.b16 %v609, %v608
    %v613 = vpack.c.b16 %v611, %v610
    %616 = vmatprep.subr.bf16.mxu0 0
    %617 = vmatpush1.bf16.msra.mxu0 %v612
    %618 = vmatprep.subr.bf16.mxu0 0
    %619 = vmatpush1.bf16.msra.mxu0 %v613
    %620 = vmatprep.subr.bf16.mxu0 0
    %621 = vmatpush1.bf16.msra.mxu0 0
    %622 = vmatprep.subr.bf16.mxu0 0
    %623 = vmatpush1.bf16.msra.mxu0 0
    %624 = vmatprep.subr.bf16.mxu0 0
    %625 = vmatpush1.bf16.msra.mxu0 0
    %626 = vmatprep.subr.bf16.mxu0 0
    %627 = vmatpush1.bf16.msra.mxu0 0
    %628 = vmatprep.subr.bf16.mxu0 0
    %629 = vmatpush1.bf16.msra.mxu0 0
    %630 = vmatprep.subr.bf16.mxu0 0
    %631 = vmatpush1.bf16.msra.mxu0 0
    %632 = vmatprep.subr.bf16.mxu0 0
    %633 = vmatpush1.bf16.msra.mxu0 0
    %634 = vmatprep.subr.bf16.mxu0 0
    %635 = vmatpush1.bf16.msra.mxu0 0
    %636 = vmatprep.subr.bf16.mxu0 0
    %637 = vmatpush1.bf16.msra.mxu0 0
    %638 = vmatprep.subr.bf16.mxu0 0
    %639 = vmatpush1.bf16.msra.mxu0 0
    %640 = vmatprep.subr.bf16.mxu0 0
    %641 = vmatpush1.bf16.msra.mxu0 0
    %642 = vmatprep.subr.bf16.mxu0 0
    %643 = vmatpush1.bf16.msra.mxu0 0
    %644 = vmatprep.subr.bf16.mxu0 0
    %645 = vmatpush1.bf16.msra.mxu0 0
    %646 = vmatprep.subr.bf16.mxu0 0
    %647 = vmatpush1.bf16.msra.mxu0 0
    %648 = vmatprep.mubr.bf16.mxu0 0
    %649 = vmatmul.mubr.bf16.gmra.mrb[0].mxu0 %v84
    %v650 = vpop.f32.mrb[0].mxu0
    %v651 = vadd.f32 0.0, %v650
    %v652 = vpop.f32.mrb[0].mxu0
    %v653 = vpop.f32.mrb[0].mxu0
    %v654 = vadd.f32 0.0, %v653
    %v655 = vpop.f32.mrb[0].mxu0
    %656 = vdwg.mxu0
    %v661 = vunpack.c.l.b16 %v66
    %v662 = vunpack.c.l.b16 %v67
    %v663 = vunpack.c.l.b16 %v68
    %v664 = vunpack.c.l.b16 %v69
    %v665 = vpack.c.b16 %v662, %v661
    %v666 = vpack.c.b16 %v664, %v663
    %669 = vmatprep.subr.bf16.mxu0 0
    %670 = vmatpush1.bf16.msra.mxu0 %v665
    %671 = vmatprep.subr.bf16.mxu0 0
    %672 = vmatpush1.bf16.msra.mxu0 %v666
    %673 = vmatprep.subr.bf16.mxu0 0
    %674 = vmatpush1.bf16.msra.mxu0 0
    %675 = vmatprep.subr.bf16.mxu0 0
    %676 = vmatpush1.bf16.msra.mxu0 0
    %677 = vmatprep.subr.bf16.mxu0 0
    %678 = vmatpush1.bf16.msra.mxu0 0
    %679 = vmatprep.subr.bf16.mxu0 0
    %680 = vmatpush1.bf16.msra.mxu0 0
    %681 = vmatprep.subr.bf16.mxu0 0
    %682 = vmatpush1.bf16.msra.mxu0 0
    %683 = vmatprep.subr.bf16.mxu0 0
    %684 = vmatpush1.bf16.msra.mxu0 0
    %685 = vmatprep.subr.bf16.mxu0 0
    %686 = vmatpush1.bf16.msra.mxu0 0
    %687 = vmatprep.subr.bf16.mxu0 0
    %688 = vmatpush1.bf16.msra.mxu0 0
    %689 = vmatprep.subr.bf16.mxu0 0
    %690 = vmatpush1.bf16.msra.mxu0 0
    %691 = vmatprep.subr.bf16.mxu0 0
    %692 = vmatpush1.bf16.msra.mxu0 0
    %693 = vmatprep.subr.bf16.mxu0 0
    %694 = vmatpush1.bf16.msra.mxu0 0
    %695 = vmatprep.subr.bf16.mxu0 0
    %696 = vmatpush1.bf16.msra.mxu0 0
    %697 = vmatprep.subr.bf16.mxu0 0
    %698 = vmatpush1.bf16.msra.mxu0 0
    %699 = vmatprep.subr.bf16.mxu0 0
    %700 = vmatpush1.bf16.msra.mxu0 0
    %701 = vmatprep.mubr.bf16.mxu0 0
    %702 = vmatmul.mubr.bf16.gmra.mrb[0].mxu0 %v84
    %v703 = vpop.f32.mrb[0].mxu0
    %v704 = vadd.f32 0.0, %v703
    %v705 = vpop.f32.mrb[0].mxu0
    %v706 = vpop.f32.mrb[0].mxu0
    %v707 = vadd.f32 0.0, %v706
    %v708 = vpop.f32.mrb[0].mxu0
    %709 = vdwg.mxu0
    %v710 = vpack.c.bf16 %v121, %v121
    %v711 = vpack.c.bf16 %v124, %v124
    %v712 = vpack.c.bf16 %v174, %v174
    %v713 = vpack.c.bf16 %v177, %v177
    %v714 = vpack.c.bf16 %v227, %v227
    %v715 = vpack.c.bf16 %v230, %v230
    %v716 = vpack.c.bf16 %v280, %v280
    %v717 = vpack.c.bf16 %v283, %v283
    %v718 = vpack.c.bf16 %v333, %v333
    %v719 = vpack.c.bf16 %v336, %v336
    %v720 = vpack.c.bf16 %v386, %v386
    %v721 = vpack.c.bf16 %v389, %v389
    %v722 = vpack.c.bf16 %v439, %v439
    %v723 = vpack.c.bf16 %v442, %v442
    %v724 = vpack.c.bf16 %v492, %v492
    %v725 = vpack.c.bf16 %v495, %v495
    %v726 = vpack.c.bf16 %v545, %v545
    %v727 = vpack.c.bf16 %v548, %v548
    %v728 = vpack.c.bf16 %v598, %v598
    %v729 = vpack.c.bf16 %v601, %v601
    %v730 = vpack.c.bf16 %v651, %v651
    %v731 = vpack.c.bf16 %v654, %v654
    %v732 = vpack.c.bf16 %v704, %v704
    %v733 = vpack.c.bf16 %v707, %v707
    %vm734 = vcmask 64512
    %v736 = vsel %vm734, %v710, 0
    %v739 = vsel %vm734, %v718, 0
    %741 = vmatprep.subr.bf16.mxu0 0
    %742 = vmatpush1.bf16.xpose.msra.mxu0 %v739
    %743 = vmatprep.subr.bf16.mxu0 0
    %744 = vmatpush1.bf16.xpose.msra.mxu0 0
    %745 = vmatprep.subr.bf16.mxu0 0
    %746 = vmatpush1.bf16.xpose.msra.mxu0 0
    %747 = vmatprep.subr.bf16.mxu0 0
    %748 = vmatpush1.bf16.xpose.msra.mxu0 0
    %749 = vmatprep.subr.bf16.mxu0 0
    %750 = vmatpush1.bf16.xpose.msra.mxu0 0
    %751 = vmatprep.subr.bf16.mxu0 0
    %752 = vmatpush1.bf16.xpose.msra.mxu0 0
    %753 = vmatprep.subr.bf16.mxu0 0
    %754 = vmatpush1.bf16.xpose.msra.mxu0 0
    %755 = vmatprep.subr.bf16.mxu0 0
    %756 = vmatpush1.bf16.xpose.msra.mxu0 0
    %757 = vmatprep.subr.bf16.mxu0 0
    %758 = vmatpush1.bf16.xpose.msra.mxu0 0
    %759 = vmatprep.subr.bf16.mxu0 0
    %760 = vmatpush1.bf16.xpose.msra.mxu0 0
    %761 = vmatprep.subr.bf16.mxu0 0
    %762 = vmatpush1.bf16.xpose.msra.mxu0 0
    %763 = vmatprep.subr.bf16.mxu0 0
    %764 = vmatpush1.bf16.xpose.msra.mxu0 0
    %765 = vmatprep.subr.bf16.mxu0 0
    %766 = vmatpush1.bf16.xpose.msra.mxu0 0
    %767 = vmatprep.subr.bf16.mxu0 0
    %768 = vmatpush1.bf16.xpose.msra.mxu0 0
    %769 = vmatprep.subr.bf16.mxu0 0
    %770 = vmatpush1.bf16.xpose.msra.mxu0 0
    %771 = vmatprep.subr.bf16.mxu0 0
    %772 = vmatpush1.bf16.xpose.msra.mxu0 0
    %773 = vmatprep.mubr.bf16.mxu0 0
    %774 = vmatmul.mubr.bf16.gmra.mrb[0].mxu0 %v736
    %v775 = vpop.f32.mrb[0].mxu0
    %v776 = vadd.f32 0.0, %v775
    %v777 = vpop.f32.mrb[0].mxu0
    %v778 = vpop.f32.mrb[0].mxu0
    %v779 = vpop.f32.mrb[0].mxu0
    %780 = vdwg.mxu0
    %v782 = vsel %vm734, %v711, 0
    %v785 = vsel %vm734, %v719, 0
    %787 = vmatprep.subr.bf16.mxu0 0
    %788 = vmatpush1.bf16.xpose.msra.mxu0 %v785
    %789 = vmatprep.subr.bf16.mxu0 0
    %790 = vmatpush1.bf16.xpose.msra.mxu0 0
    %791 = vmatprep.subr.bf16.mxu0 0
    %792 = vmatpush1.bf16.xpose.msra.mxu0 0
    %793 = vmatprep.subr.bf16.mxu0 0
    %794 = vmatpush1.bf16.xpose.msra.mxu0 0
    %795 = vmatprep.subr.bf16.mxu0 0
    %796 = vmatpush1.bf16.xpose.msra.mxu0 0
    %797 = vmatprep.subr.bf16.mxu0 0
    %798 = vmatpush1.bf16.xpose.msra.mxu0 0
    %799 = vmatprep.subr.bf16.mxu0 0
    %800 = vmatpush1.bf16.xpose.msra.mxu0 0
    %801 = vmatprep.subr.bf16.mxu0 0
    %802 = vmatpush1.bf16.xpose.msra.mxu0 0
    %803 = vmatprep.subr.bf16.mxu0 0
    %804 = vmatpush1.bf16.xpose.msra.mxu0 0
    %805 = vmatprep.subr.bf16.mxu0 0
    %806 = vmatpush1.bf16.xpose.msra.mxu0 0
    %807 = vmatprep.subr.bf16.mxu0 0
    %808 = vmatpush1.bf16.xpose.msra.mxu0 0
    %809 = vmatprep.subr.bf16.mxu0 0
    %810 = vmatpush1.bf16.xpose.msra.mxu0 0
    %811 = vmatprep.subr.bf16.mxu0 0
    %812 = vmatpush1.bf16.xpose.msra.mxu0 0
    %813 = vmatprep.subr.bf16.mxu0 0
    %814 = vmatpush1.bf16.xpose.msra.mxu0 0
    %815 = vmatprep.subr.bf16.mxu0 0
    %816 = vmatpush1.bf16.xpose.msra.mxu0 0
    %817 = vmatprep.subr.bf16.mxu0 0
    %818 = vmatpush1.bf16.xpose.msra.mxu0 0
    %819 = vmatprep.mubr.bf16.mxu0 0
    %820 = vmatmul.mubr.bf16.gmra.mrb[0].mxu0 %v782
    %v821 = vpop.f32.mrb[0].mxu0
    %v822 = vadd.f32 0.0, %v821
    %v823 = vpop.f32.mrb[0].mxu0
    %v824 = vpop.f32.mrb[0].mxu0
    %v825 = vpop.f32.mrb[0].mxu0
    %826 = vdwg.mxu0
    %v828 = vsel %vm734, %v712, 0
    %v831 = vsel %vm734, %v720, 0
    %833 = vmatprep.subr.bf16.mxu0 0
    %834 = vmatpush1.bf16.xpose.msra.mxu0 %v831
    %835 = vmatprep.subr.bf16.mxu0 0
    %836 = vmatpush1.bf16.xpose.msra.mxu0 0
    %837 = vmatprep.subr.bf16.mxu0 0
    %838 = vmatpush1.bf16.xpose.msra.mxu0 0
    %839 = vmatprep.subr.bf16.mxu0 0
    %840 = vmatpush1.bf16.xpose.msra.mxu0 0
    %841 = vmatprep.subr.bf16.mxu0 0
    %842 = vmatpush1.bf16.xpose.msra.mxu0 0
    %843 = vmatprep.subr.bf16.mxu0 0
    %844 = vmatpush1.bf16.xpose.msra.mxu0 0
    %845 = vmatprep.subr.bf16.mxu0 0
    %846 = vmatpush1.bf16.xpose.msra.mxu0 0
    %847 = vmatprep.subr.bf16.mxu0 0
    %848 = vmatpush1.bf16.xpose.msra.mxu0 0
    %849 = vmatprep.subr.bf16.mxu0 0
    %850 = vmatpush1.bf16.xpose.msra.mxu0 0
    %851 = vmatprep.subr.bf16.mxu0 0
    %852 = vmatpush1.bf16.xpose.msra.mxu0 0
    %853 = vmatprep.subr.bf16.mxu0 0
    %854 = vmatpush1.bf16.xpose.msra.mxu0 0
    %855 = vmatprep.subr.bf16.mxu0 0
    %856 = vmatpush1.bf16.xpose.msra.mxu0 0
    %857 = vmatprep.subr.bf16.mxu0 0
    %858 = vmatpush1.bf16.xpose.msra.mxu0 0
    %859 = vmatprep.subr.bf16.mxu0 0
    %860 = vmatpush1.bf16.xpose.msra.mxu0 0
    %861 = vmatprep.subr.bf16.mxu0 0
    %862 = vmatpush1.bf16.xpose.msra.mxu0 0
    %863 = vmatprep.subr.bf16.mxu0 0
    %864 = vmatpush1.bf16.xpose.msra.mxu0 0
    %865 = vmatprep.mubr.bf16.mxu0 0
    %866 = vmatmul.mubr.bf16.gmra.mrb[0].mxu0 %v828
    %v867 = vpop.f32.mrb[0].mxu0
    %v868 = vadd.f32 0.0, %v867
    %v869 = vpop.f32.mrb[0].mxu0
    %v870 = vpop.f32.mrb[0].mxu0
    %v871 = vpop.f32.mrb[0].mxu0
    %872 = vdwg.mxu0
    %v874 = vsel %vm734, %v713, 0
    %v877 = vsel %vm734, %v721, 0
    %879 = vmatprep.subr.bf16.mxu0 0
    %880 = vmatpush1.bf16.xpose.msra.mxu0 %v877
    %881 = vmatprep.subr.bf16.mxu0 0
    %882 = vmatpush1.bf16.xpose.msra.mxu0 0
    %883 = vmatprep.subr.bf16.mxu0 0
    %884 = vmatpush1.bf16.xpose.msra.mxu0 0
    %885 = vmatprep.subr.bf16.mxu0 0
    %886 = vmatpush1.bf16.xpose.msra.mxu0 0
    %887 = vmatprep.subr.bf16.mxu0 0
    %888 = vmatpush1.bf16.xpose.msra.mxu0 0
    %889 = vmatprep.subr.bf16.mxu0 0
    %890 = vmatpush1.bf16.xpose.msra.mxu0 0
    %891 = vmatprep.subr.bf16.mxu0 0
    %892 = vmatpush1.bf16.xpose.msra.mxu0 0
    %893 = vmatprep.subr.bf16.mxu0 0
    %894 = vmatpush1.bf16.xpose.msra.mxu0 0
    %895 = vmatprep.subr.bf16.mxu0 0
    %896 = vmatpush1.bf16.xpose.msra.mxu0 0
    %897 = vmatprep.subr.bf16.mxu0 0
    %898 = vmatpush1.bf16.xpose.msra.mxu0 0
    %899 = vmatprep.subr.bf16.mxu0 0
    %900 = vmatpush1.bf16.xpose.msra.mxu0 0
    %901 = vmatprep.subr.bf16.mxu0 0
    %902 = vmatpush1.bf16.xpose.msra.mxu0 0
    %903 = vmatprep.subr.bf16.mxu0 0
    %904 = vmatpush1.bf16.xpose.msra.mxu0 0
    %905 = vmatprep.subr.bf16.mxu0 0
    %906 = vmatpush1.bf16.xpose.msra.mxu0 0
    %907 = vmatprep.subr.bf16.mxu0 0
    %908 = vmatpush1.bf16.xpose.msra.mxu0 0
    %909 = vmatprep.subr.bf16.mxu0 0
    %910 = vmatpush1.bf16.xpose.msra.mxu0 0
    %911 = vmatprep.mubr.bf16.mxu0 0
    %912 = vmatmul.mubr.bf16.gmra.mrb[0].mxu0 %v874
    %v913 = vpop.f32.mrb[0].mxu0
    %v914 = vadd.f32 0.0, %v913
    %v915 = vpop.f32.mrb[0].mxu0
    %v916 = vpop.f32.mrb[0].mxu0
    %v917 = vpop.f32.mrb[0].mxu0
    %918 = vdwg.mxu0
    %v920 = vsel %vm734, %v714, 0
    %v923 = vsel %vm734, %v722, 0
    %925 = vmatprep.subr.bf16.mxu0 0
    %926 = vmatpush1.bf16.xpose.msra.mxu0 %v923
    %927 = vmatprep.subr.bf16.mxu0 0
    %928 = vmatpush1.bf16.xpose.msra.mxu0 0
    %929 = vmatprep.subr.bf16.mxu0 0
    %930 = vmatpush1.bf16.xpose.msra.mxu0 0
    %931 = vmatprep.subr.bf16.mxu0 0
    %932 = vmatpush1.bf16.xpose.msra.mxu0 0
    %933 = vmatprep.subr.bf16.mxu0 0
    %934 = vmatpush1.bf16.xpose.msra.mxu0 0
    %935 = vmatprep.subr.bf16.mxu0 0
    %936 = vmatpush1.bf16.xpose.msra.mxu0 0
    %937 = vmatprep.subr.bf16.mxu0 0
    %938 = vmatpush1.bf16.xpose.msra.mxu0 0
    %939 = vmatprep.subr.bf16.mxu0 0
    %940 = vmatpush1.bf16.xpose.msra.mxu0 0
    %941 = vmatprep.subr.bf16.mxu0 0
    %942 = vmatpush1.bf16.xpose.msra.mxu0 0
    %943 = vmatprep.subr.bf16.mxu0 0
    %944 = vmatpush1.bf16.xpose.msra.mxu0 0
    %945 = vmatprep.subr.bf16.mxu0 0
    %946 = vmatpush1.bf16.xpose.msra.mxu0 0
    %947 = vmatprep.subr.bf16.mxu0 0
    %948 = vmatpush1.bf16.xpose.msra.mxu0 0
    %949 = vmatprep.subr.bf16.mxu0 0
    %950 = vmatpush1.bf16.xpose.msra.mxu0 0
    %951 = vmatprep.subr.bf16.mxu0 0
    %952 = vmatpush1.bf16.xpose.msra.mxu0 0
    %953 = vmatprep.subr.bf16.mxu0 0
    %954 = vmatpush1.bf16.xpose.msra.mxu0 0
    %955 = vmatprep.subr.bf16.mxu0 0
    %956 = vmatpush1.bf16.xpose.msra.mxu0 0
    %957 = vmatprep.mubr.bf16.mxu0 0
    %958 = vmatmul.mubr.bf16.gmra.mrb[0].mxu0 %v920
    %v959 = vpop.f32.mrb[0].mxu0
    %v960 = vadd.f32 0.0, %v959
    %v961 = vpop.f32.mrb[0].mxu0
    %v962 = vpop.f32.mrb[0].mxu0
    %v963 = vpop.f32.mrb[0].mxu0
    %964 = vdwg.mxu0
    %v966 = vsel %vm734, %v715, 0
    %v969 = vsel %vm734, %v723, 0
    %971 = vmatprep.subr.bf16.mxu0 0
    %972 = vmatpush1.bf16.xpose.msra.mxu0 %v969
    %973 = vmatprep.subr.bf16.mxu0 0
    %974 = vmatpush1.bf16.xpose.msra.mxu0 0
    %975 = vmatprep.subr.bf16.mxu0 0
    %976 = vmatpush1.bf16.xpose.msra.mxu0 0
    %977 = vmatprep.subr.bf16.mxu0 0
    %978 = vmatpush1.bf16.xpose.msra.mxu0 0
    %979 = vmatprep.subr.bf16.mxu0 0
    %980 = vmatpush1.bf16.xpose.msra.mxu0 0
    %981 = vmatprep.subr.bf16.mxu0 0
    %982 = vmatpush1.bf16.xpose.msra.mxu0 0
    %983 = vmatprep.subr.bf16.mxu0 0
    %984 = vmatpush1.bf16.xpose.msra.mxu0 0
    %985 = vmatprep.subr.bf16.mxu0 0
    %986 = vmatpush1.bf16.xpose.msra.mxu0 0
    %987 = vmatprep.subr.bf16.mxu0 0
    %988 = vmatpush1.bf16.xpose.msra.mxu0 0
    %989 = vmatprep.subr.bf16.mxu0 0
    %990 = vmatpush1.bf16.xpose.msra.mxu0 0
    %991 = vmatprep.subr.bf16.mxu0 0
    %992 = vmatpush1.bf16.xpose.msra.mxu0 0
    %993 = vmatprep.subr.bf16.mxu0 0
    %994 = vmatpush1.bf16.xpose.msra.mxu0 0
    %995 = vmatprep.subr.bf16.mxu0 0
    %996 = vmatpush1.bf16.xpose.msra.mxu0 0
    %997 = vmatprep.subr.bf16.mxu0 0
    %998 = vmatpush1.bf16.xpose.msra.mxu0 0
    %999 = vmatprep.subr.bf16.mxu0 0
    %1000 = vmatpush1.bf16.xpose.msra.mxu0 0
    %1001 = vmatprep.subr.bf16.mxu0 0
    %1002 = vmatpush1.bf16.xpose.msra.mxu0 0
    %1003 = vmatprep.mubr.bf16.mxu0 0
    %1004 = vmatmul.mubr.bf16.gmra.mrb[0].mxu0 %v966
    %v1005 = vpop.f32.mrb[0].mxu0
    %v1006 = vadd.f32 0.0, %v1005
    %v1007 = vpop.f32.mrb[0].mxu0
    %v1008 = vpop.f32.mrb[0].mxu0
    %v1009 = vpop.f32.mrb[0].mxu0
    %1010 = vdwg.mxu0
    %v1012 = vsel %vm734, %v716, 0
    %v1015 = vsel %vm734, %v724, 0
    %1017 = vmatprep.subr.bf16.mxu0 0
    %1018 = vmatpush1.bf16.xpose.msra.mxu0 %v1015
    %1019 = vmatprep.subr.bf16.mxu0 0
    %1020 = vmatpush1.bf16.xpose.msra.mxu0 0
    %1021 = vmatprep.subr.bf16.mxu0 0
    %1022 = vmatpush1.bf16.xpose.msra.mxu0 0
    %1023 = vmatprep.subr.bf16.mxu0 0
    %1024 = vmatpush1.bf16.xpose.msra.mxu0 0
    %1025 = vmatprep.subr.bf16.mxu0 0
    %1026 = vmatpush1.bf16.xpose.msra.mxu0 0
    %1027 = vmatprep.subr.bf16.mxu0 0
    %1028 = vmatpush1.bf16.xpose.msra.mxu0 0
    %1029 = vmatprep.subr.bf16.mxu0 0
    %1030 = vmatpush1.bf16.xpose.msra.mxu0 0
    %1031 = vmatprep.subr.bf16.mxu0 0
    %1032 = vmatpush1.bf16.xpose.msra.mxu0 0
    %1033 = vmatprep.subr.bf16.mxu0 0
    %1034 = vmatpush1.bf16.xpose.msra.mxu0 0
    %1035 = vmatprep.subr.bf16.mxu0 0
    %1036 = vmatpush1.bf16.xpose.msra.mxu0 0
    %1037 = vmatprep.subr.bf16.mxu0 0
    %1038 = vmatpush1.bf16.xpose.msra.mxu0 0
    %1039 = vmatprep.subr.bf16.mxu0 0
    %1040 = vmatpush1.bf16.xpose.msra.mxu0 0
    %1041 = vmatprep.subr.bf16.mxu0 0
    %1042 = vmatpush1.bf16.xpose.msra.mxu0 0
    %1043 = vmatprep.subr.bf16.mxu0 0
    %1044 = vmatpush1.bf16.xpose.msra.mxu0 0
    %1045 = vmatprep.subr.bf16.mxu0 0
    %1046 = vmatpush1.bf16.xpose.msra.mxu0 0
    %1047 = vmatprep.subr.bf16.mxu0 0
    %1048 = vmatpush1.bf16.xpose.msra.mxu0 0
    %1049 = vmatprep.mubr.bf16.mxu0 0
    %1050 = vmatmul.mubr.bf16.gmra.mrb[0].mxu0 %v1012
    %v1051 = vpop.f32.mrb[0].mxu0
    %v1052 = vadd.f32 0.0, %v1051
    %v1053 = vpop.f32.mrb[0].mxu0
    %v1054 = vpop.f32.mrb[0].mxu0
    %v1055 = vpop.f32.mrb[0].mxu0
    %1056 = vdwg.mxu0
    %v1058 = vsel %vm734, %v717, 0
    %v1061 = vsel %vm734, %v725, 0
    %1063 = vmatprep.subr.bf16.mxu0 0
    %1064 = vmatpush1.bf16.xpose.msra.mxu0 %v1061
    %1065 = vmatprep.subr.bf16.mxu0 0
    %1066 = vmatpush1.bf16.xpose.msra.mxu0 0
    %1067 = vmatprep.subr.bf16.mxu0 0
    %1068 = vmatpush1.bf16.xpose.msra.mxu0 0
    %1069 = vmatprep.subr.bf16.mxu0 0
    %1070 = vmatpush1.bf16.xpose.msra.mxu0 0
    %1071 = vmatprep.subr.bf16.mxu0 0
    %1072 = vmatpush1.bf16.xpose.msra.mxu0 0
    %1073 = vmatprep.subr.bf16.mxu0 0
    %1074 = vmatpush1.bf16.xpose.msra.mxu0 0
    %1075 = vmatprep.subr.bf16.mxu0 0
    %1076 = vmatpush1.bf16.xpose.msra.mxu0 0
    %1077 = vmatprep.subr.bf16.mxu0 0
    %1078 = vmatpush1.bf16.xpose.msra.mxu0 0
    %1079 = vmatprep.subr.bf16.mxu0 0
    %1080 = vmatpush1.bf16.xpose.msra.mxu0 0
    %1081 = vmatprep.subr.bf16.mxu0 0
    %1082 = vmatpush1.bf16.xpose.msra.mxu0 0
    %1083 = vmatprep.subr.bf16.mxu0 0
    %1084 = vmatpush1.bf16.xpose.msra.mxu0 0
    %1085 = vmatprep.subr.bf16.mxu0 0
    %1086 = vmatpush1.bf16.xpose.msra.mxu0 0
    %1087 = vmatprep.subr.bf16.mxu0 0
    %1088 = vmatpush1.bf16.xpose.msra.mxu0 0
    %1089 = vmatprep.subr.bf16.mxu0 0
    %1090 = vmatpush1.bf16.xpose.msra.mxu0 0
    %1091 = vmatprep.subr.bf16.mxu0 0
    %1092 = vmatpush1.bf16.xpose.msra.mxu0 0
    %1093 = vmatprep.subr.bf16.mxu0 0
    %1094 = vmatpush1.bf16.xpose.msra.mxu0 0
    %1095 = vmatprep.mubr.bf16.mxu0 0
    %1096 = vmatmul.mubr.bf16.gmra.mrb[0].mxu0 %v1058
    %v1097 = vpop.f32.mrb[0].mxu0
    %v1098 = vadd.f32 0.0, %v1097
    %v1099 = vpop.f32.mrb[0].mxu0
    %v1100 = vpop.f32.mrb[0].mxu0
    %v1101 = vpop.f32.mrb[0].mxu0
    %1102 = vdwg.mxu0
    %v1103 = vsel %vm734, %v776, -inf
    %1104 = vmax.xlane.f32.xlu0 %v1103
    %v1105 = vpop.xlane.xlu0 %1104
    %v1106 = vsel %vm734, %v822, -inf
    %1107 = vmax.xlane.f32.xlu0 %v1106
    %v1108 = vpop.xlane.xlu0 %1107
    %v1109 = vsel %vm734, %v868, -inf
    %1110 = vmax.xlane.f32.xlu0 %v1109
    %v1111 = vpop.xlane.xlu0 %1110
    %v1112 = vsel %vm734, %v914, -inf
    %1113 = vmax.xlane.f32.xlu0 %v1112
    %v1114 = vpop.xlane.xlu0 %1113
    %v1115 = vsel %vm734, %v960, -inf
    %1116 = vmax.xlane.f32.xlu0 %v1115
    %v1117 = vpop.xlane.xlu0 %1116
    %v1118 = vsel %vm734, %v1006, -inf
    %1119 = vmax.xlane.f32.xlu0 %v1118
    %v1120 = vpop.xlane.xlu0 %1119
    %v1121 = vsel %vm734, %v1052, -inf
    %1122 = vmax.xlane.f32.xlu0 %v1121
    %v1123 = vpop.xlane.xlu0 %1122
    %v1124 = vsel %vm734, %v1098, -inf
    %1125 = vmax.xlane.f32.xlu0 %v1124
    %v1126 = vpop.xlane.xlu0 %1125
    %v1127 = vsub.f32 %v776, %v1105
    %v1128 = vsub.f32 %v822, %v1108
    %v1129 = vsub.f32 %v868, %v1111
    %v1130 = vsub.f32 %v914, %v1114
    %v1131 = vsub.f32 %v960, %v1117
    %v1132 = vsub.f32 %v1006, %v1120
    %v1133 = vsub.f32 %v1052, %v1123
    %v1134 = vsub.f32 %v1098, %v1126
    %v1135 = vmul.f32 %v1127, 1.442695
    %v1136 = vpow.pop %v1135
    %v1137 = vmul.f32 %v1128, 1.442695
    %v1138 = vpow.pop %v1137
    %v1139 = vmul.f32 %v1129, 1.442695
    %v1140 = vpow.pop %v1139
    %v1141 = vmul.f32 %v1130, 1.442695
    %v1142 = vpow.pop %v1141
    %v1143 = vmul.f32 %v1131, 1.442695
    %v1144 = vpow.pop %v1143
    %v1145 = vmul.f32 %v1132, 1.442695
    %v1146 = vpow.pop %v1145
    %v1147 = vmul.f32 %v1133, 1.442695
    %v1148 = vpow.pop %v1147
    %v1149 = vmul.f32 %v1134, 1.442695
    %v1150 = vpow.pop %v1149
    %v1151 = vsel %vm734, %v1136, 0.0
    %1152 = vadd.xlane.f32.xlu0 %v1151
    %v1153 = vpop.xlane.xlu0 %1152
    %v1154 = vsel %vm734, %v1138, 0.0
    %1155 = vadd.xlane.f32.xlu0 %v1154
    %v1156 = vpop.xlane.xlu0 %1155
    %v1157 = vsel %vm734, %v1140, 0.0
    %1158 = vadd.xlane.f32.xlu0 %v1157
    %v1159 = vpop.xlane.xlu0 %1158
    %v1160 = vsel %vm734, %v1142, 0.0
    %1161 = vadd.xlane.f32.xlu0 %v1160
    %v1162 = vpop.xlane.xlu0 %1161
    %v1163 = vsel %vm734, %v1144, 0.0
    %1164 = vadd.xlane.f32.xlu0 %v1163
    %v1165 = vpop.xlane.xlu0 %1164
    %v1166 = vsel %vm734, %v1146, 0.0
    %1167 = vadd.xlane.f32.xlu0 %v1166
    %v1168 = vpop.xlane.xlu0 %1167
    %v1169 = vsel %vm734, %v1148, 0.0
    %1170 = vadd.xlane.f32.xlu0 %v1169
    %v1171 = vpop.xlane.xlu0 %1170
    %v1172 = vsel %vm734, %v1150, 0.0
    %1173 = vadd.xlane.f32.xlu0 %v1172
    %v1174 = vpop.xlane.xlu0 %1173
    %v1175 = vpack.c.bf16 %v1136, %v1136
    %v1176 = vpack.c.bf16 %v1138, %v1138
    %v1177 = vpack.c.bf16 %v1140, %v1140
    %v1178 = vpack.c.bf16 %v1142, %v1142
    %v1179 = vpack.c.bf16 %v1144, %v1144
    %v1180 = vpack.c.bf16 %v1146, %v1146
    %v1181 = vpack.c.bf16 %v1148, %v1148
    %v1182 = vpack.c.bf16 %v1150, %v1150
    %v1184 = vsel %vm734, %v1175, 0
    %vm1186 = vcmask 1043456
    %v1188 = vsel %vm1186, %v726, 0
    %1190 = vmatprep.subr.bf16.mxu0 0
    %1191 = vmatpush1.bf16.msra.mxu0 %v1188
    %1192 = vmatprep.subr.bf16.mxu0 0
    %1193 = vmatpush1.bf16.msra.mxu0 0
    %1194 = vmatprep.subr.bf16.mxu0 0
    %1195 = vmatpush1.bf16.msra.mxu0 0
    %1196 = vmatprep.subr.bf16.mxu0 0
    %1197 = vmatpush1.bf16.msra.mxu0 0
    %1198 = vmatprep.subr.bf16.mxu0 0
    %1199 = vmatpush1.bf16.msra.mxu0 0
    %1200 = vmatprep.subr.bf16.mxu0 0
    %1201 = vmatpush1.bf16.msra.mxu0 0
    %1202 = vmatprep.subr.bf16.mxu0 0
    %1203 = vmatpush1.bf16.msra.mxu0 0
    %1204 = vmatprep.subr.bf16.mxu0 0
    %1205 = vmatpush1.bf16.msra.mxu0 0
    %1206 = vmatprep.subr.bf16.mxu0 0
    %1207 = vmatpush1.bf16.msra.mxu0 0
    %1208 = vmatprep.subr.bf16.mxu0 0
    %1209 = vmatpush1.bf16.msra.mxu0 0
    %1210 = vmatprep.subr.bf16.mxu0 0
    %1211 = vmatpush1.bf16.msra.mxu0 0
    %1212 = vmatprep.subr.bf16.mxu0 0
    %1213 = vmatpush1.bf16.msra.mxu0 0
    %1214 = vmatprep.subr.bf16.mxu0 0
    %1215 = vmatpush1.bf16.msra.mxu0 0
    %1216 = vmatprep.subr.bf16.mxu0 0
    %1217 = vmatpush1.bf16.msra.mxu0 0
    %1218 = vmatprep.subr.bf16.mxu0 0
    %1219 = vmatpush1.bf16.msra.mxu0 0
    %1220 = vmatprep.subr.bf16.mxu0 0
    %1221 = vmatpush1.bf16.msra.mxu0 0
    %1222 = vmatprep.mubr.bf16.mxu0 0
    %1223 = vmatmul.mubr.bf16.gmra.mrb[0].mxu0 %v1184
    %v1224 = vpop.f32.mrb[0].mxu0
    %v1225 = vadd.f32 0.0, %v1224
    %v1226 = vpop.f32.mrb[0].mxu0
    %v1227 = vpop.f32.mrb[0].mxu0
    %v1228 = vpop.f32.mrb[0].mxu0
    %1229 = vdwg.mxu0
    %v1231 = vsel %vm734, %v1176, 0
    %v1234 = vsel %vm1186, %v727, 0
    %1236 = vmatprep.subr.bf16.mxu0 0
    %1237 = vmatpush1.bf16.msra.mxu0 %v1234
    %1238 = vmatprep.subr.bf16.mxu0 0
    %1239 = vmatpush1.bf16.msra.mxu0 0
    %1240 = vmatprep.subr.bf16.mxu0 0
    %1241 = vmatpush1.bf16.msra.mxu0 0
    %1242 = vmatprep.subr.bf16.mxu0 0
    %1243 = vmatpush1.bf16.msra.mxu0 0
    %1244 = vmatprep.subr.bf16.mxu0 0
    %1245 = vmatpush1.bf16.msra.mxu0 0
    %1246 = vmatprep.subr.bf16.mxu0 0
    %1247 = vmatpush1.bf16.msra.mxu0 0
    %1248 = vmatprep.subr.bf16.mxu0 0
    %1249 = vmatpush1.bf16.msra.mxu0 0
    %1250 = vmatprep.subr.bf16.mxu0 0
    %1251 = vmatpush1.bf16.msra.mxu0 0
    %1252 = vmatprep.subr.bf16.mxu0 0
    %1253 = vmatpush1.bf16.msra.mxu0 0
    %1254 = vmatprep.subr.bf16.mxu0 0
    %1255 = vmatpush1.bf16.msra.mxu0 0
    %1256 = vmatprep.subr.bf16.mxu0 0
    %1257 = vmatpush1.bf16.msra.mxu0 0
    %1258 = vmatprep.subr.bf16.mxu0 0
    %1259 = vmatpush1.bf16.msra.mxu0 0
    %1260 = vmatprep.subr.bf16.mxu0 0
    %1261 = vmatpush1.bf16.msra.mxu0 0
    %1262 = vmatprep.subr.bf16.mxu0 0
    %1263 = vmatpush1.bf16.msra.mxu0 0
    %1264 = vmatprep.subr.bf16.mxu0 0
    %1265 = vmatpush1.bf16.msra.mxu0 0
    %1266 = vmatprep.subr.bf16.mxu0 0
    %1267 = vmatpush1.bf16.msra.mxu0 0
    %1268 = vmatprep.mubr.bf16.mxu0 0
    %1269 = vmatmul.mubr.bf16.gmra.mrb[0].mxu0 %v1231
    %v1270 = vpop.f32.mrb[0].mxu0
    %v1271 = vadd.f32 0.0, %v1270
    %v1272 = vpop.f32.mrb[0].mxu0
    %v1273 = vpop.f32.mrb[0].mxu0
    %v1274 = vpop.f32.mrb[0].mxu0
    %1275 = vdwg.mxu0
    %v1277 = vsel %vm734, %v1177, 0
    %v1280 = vsel %vm1186, %v728, 0
    %1282 = vmatprep.subr.bf16.mxu0 0
    %1283 = vmatpush1.bf16.msra.mxu0 %v1280
    %1284 = vmatprep.subr.bf16.mxu0 0
    %1285 = vmatpush1.bf16.msra.mxu0 0
    %1286 = vmatprep.subr.bf16.mxu0 0
    %1287 = vmatpush1.bf16.msra.mxu0 0
    %1288 = vmatprep.subr.bf16.mxu0 0
    %1289 = vmatpush1.bf16.msra.mxu0 0
    %1290 = vmatprep.subr.bf16.mxu0 0
    %1291 = vmatpush1.bf16.msra.mxu0 0
    %1292 = vmatprep.subr.bf16.mxu0 0
    %1293 = vmatpush1.bf16.msra.mxu0 0
    %1294 = vmatprep.subr.bf16.mxu0 0
    %1295 = vmatpush1.bf16.msra.mxu0 0
    %1296 = vmatprep.subr.bf16.mxu0 0
    %1297 = vmatpush1.bf16.msra.mxu0 0
    %1298 = vmatprep.subr.bf16.mxu0 0
    %1299 = vmatpush1.bf16.msra.mxu0 0
    %1300 = vmatprep.subr.bf16.mxu0 0
    %1301 = vmatpush1.bf16.msra.mxu0 0
    %1302 = vmatprep.subr.bf16.mxu0 0
    %1303 = vmatpush1.bf16.msra.mxu0 0
    %1304 = vmatprep.subr.bf16.mxu0 0
    %1305 = vmatpush1.bf16.msra.mxu0 0
    %1306 = vmatprep.subr.bf16.mxu0 0
    %1307 = vmatpush1.bf16.msra.mxu0 0
    %1308 = vmatprep.subr.bf16.mxu0 0
    %1309 = vmatpush1.bf16.msra.mxu0 0
    %1310 = vmatprep.subr.bf16.mxu0 0
    %1311 = vmatpush1.bf16.msra.mxu0 0
    %1312 = vmatprep.subr.bf16.mxu0 0
    %1313 = vmatpush1.bf16.msra.mxu0 0
    %1314 = vmatprep.mubr.bf16.mxu0 0
    %1315 = vmatmul.mubr.bf16.gmra.mrb[0].mxu0 %v1277
    %v1316 = vpop.f32.mrb[0].mxu0
    %v1317 = vadd.f32 0.0, %v1316
    %v1318 = vpop.f32.mrb[0].mxu0
    %v1319 = vpop.f32.mrb[0].mxu0
    %v1320 = vpop.f32.mrb[0].mxu0
    %1321 = vdwg.mxu0
    %v1323 = vsel %vm734, %v1178, 0
    %v1326 = vsel %vm1186, %v729, 0
    %1328 = vmatprep.subr.bf16.mxu0 0
    %1329 = vmatpush1.bf16.msra.mxu0 %v1326
    %1330 = vmatprep.subr.bf16.mxu0 0
    %1331 = vmatpush1.bf16.msra.mxu0 0
    %1332 = vmatprep.subr.bf16.mxu0 0
    %1333 = vmatpush1.bf16.msra.mxu0 0
    %1334 = vmatprep.subr.bf16.mxu0 0
    %1335 = vmatpush1.bf16.msra.mxu0 0
    %1336 = vmatprep.subr.bf16.mxu0 0
    %1337 = vmatpush1.bf16.msra.mxu0 0
    %1338 = vmatprep.subr.bf16.mxu0 0
    %1339 = vmatpush1.bf16.msra.mxu0 0
    %1340 = vmatprep.subr.bf16.mxu0 0
    %1341 = vmatpush1.bf16.msra.mxu0 0
    %1342 = vmatprep.subr.bf16.mxu0 0
    %1343 = vmatpush1.bf16.msra.mxu0 0
    %1344 = vmatprep.subr.bf16.mxu0 0
    %1345 = vmatpush1.bf16.msra.mxu0 0
    %1346 = vmatprep.subr.bf16.mxu0 0
    %1347 = vmatpush1.bf16.msra.mxu0 0
    %1348 = vmatprep.subr.bf16.mxu0 0
    %1349 = vmatpush1.bf16.msra.mxu0 0
    %1350 = vmatprep.subr.bf16.mxu0 0
    %1351 = vmatpush1.bf16.msra.mxu0 0
    %1352 = vmatprep.subr.bf16.mxu0 0
    %1353 = vmatpush1.bf16.msra.mxu0 0
    %1354 = vmatprep.subr.bf16.mxu0 0
    %1355 = vmatpush1.bf16.msra.mxu0 0
    %1356 = vmatprep.subr.bf16.mxu0 0
    %1357 = vmatpush1.bf16.msra.mxu0 0
    %1358 = vmatprep.subr.bf16.mxu0 0
    %1359 = vmatpush1.bf16.msra.mxu0 0
    %1360 = vmatprep.mubr.bf16.mxu0 0
    %1361 = vmatmul.mubr.bf16.gmra.mrb[0].mxu0 %v1323
    %v1362 = vpop.f32.mrb[0].mxu0
    %v1363 = vadd.f32 0.0, %v1362
    %v1364 = vpop.f32.mrb[0].mxu0
    %v1365 = vpop.f32.mrb[0].mxu0
    %v1366 = vpop.f32.mrb[0].mxu0
    %1367 = vdwg.mxu0
    %v1369 = vsel %vm734, %v1179, 0
    %v1372 = vsel %vm1186, %v730, 0
    %1374 = vmatprep.subr.bf16.mxu0 0
    %1375 = vmatpush1.bf16.msra.mxu0 %v1372
    %1376 = vmatprep.subr.bf16.mxu0 0
    %1377 = vmatpush1.bf16.msra.mxu0 0
    %1378 = vmatprep.subr.bf16.mxu0 0
    %1379 = vmatpush1.bf16.msra.mxu0 0
    %1380 = vmatprep.subr.bf16.mxu0 0
    %1381 = vmatpush1.bf16.msra.mxu0 0
    %1382 = vmatprep.subr.bf16.mxu0 0
    %1383 = vmatpush1.bf16.msra.mxu0 0
    %1384 = vmatprep.subr.bf16.mxu0 0
    %1385 = vmatpush1.bf16.msra.mxu0 0
    %1386 = vmatprep.subr.bf16.mxu0 0
    %1387 = vmatpush1.bf16.msra.mxu0 0
    %1388 = vmatprep.subr.bf16.mxu0 0
    %1389 = vmatpush1.bf16.msra.mxu0 0
    %1390 = vmatprep.subr.bf16.mxu0 0
    %1391 = vmatpush1.bf16.msra.mxu0 0
    %1392 = vmatprep.subr.bf16.mxu0 0
    %1393 = vmatpush1.bf16.msra.mxu0 0
    %1394 = vmatprep.subr.bf16.mxu0 0
    %1395 = vmatpush1.bf16.msra.mxu0 0
    %1396 = vmatprep.subr.bf16.mxu0 0
    %1397 = vmatpush1.bf16.msra.mxu0 0
    %1398 = vmatprep.subr.bf16.mxu0 0
    %1399 = vmatpush1.bf16.msra.mxu0 0
    %1400 = vmatprep.subr.bf16.mxu0 0
    %1401 = vmatpush1.bf16.msra.mxu0 0
    %1402 = vmatprep.subr.bf16.mxu0 0
    %1403 = vmatpush1.bf16.msra.mxu0 0
    %1404 = vmatprep.subr.bf16.mxu0 0
    %1405 = vmatpush1.bf16.msra.mxu0 0
    %1406 = vmatprep.mubr.bf16.mxu0 0
    %1407 = vmatmul.mubr.bf16.gmra.mrb[0].mxu0 %v1369
    %v1408 = vpop.f32.mrb[0].mxu0
    %v1409 = vadd.f32 0.0, %v1408
    %v1410 = vpop.f32.mrb[0].mxu0
    %v1411 = vpop.f32.mrb[0].mxu0
    %v1412 = vpop.f32.mrb[0].mxu0
    %1413 = vdwg.mxu0
    %v1415 = vsel %vm734, %v1180, 0
    %v1418 = vsel %vm1186, %v731, 0
    %1420 = vmatprep.subr.bf16.mxu0 0
    %1421 = vmatpush1.bf16.msra.mxu0 %v1418
    %1422 = vmatprep.subr.bf16.mxu0 0
    %1423 = vmatpush1.bf16.msra.mxu0 0
    %1424 = vmatprep.subr.bf16.mxu0 0
    %1425 = vmatpush1.bf16.msra.mxu0 0
    %1426 = vmatprep.subr.bf16.mxu0 0
    %1427 = vmatpush1.bf16.msra.mxu0 0
    %1428 = vmatprep.subr.bf16.mxu0 0
    %1429 = vmatpush1.bf16.msra.mxu0 0
    %1430 = vmatprep.subr.bf16.mxu0 0
    %1431 = vmatpush1.bf16.msra.mxu0 0
    %1432 = vmatprep.subr.bf16.mxu0 0
    %1433 = vmatpush1.bf16.msra.mxu0 0
    %1434 = vmatprep.subr.bf16.mxu0 0
    %1435 = vmatpush1.bf16.msra.mxu0 0
    %1436 = vmatprep.subr.bf16.mxu0 0
    %1437 = vmatpush1.bf16.msra.mxu0 0
    %1438 = vmatprep.subr.bf16.mxu0 0
    %1439 = vmatpush1.bf16.msra.mxu0 0
    %1440 = vmatprep.subr.bf16.mxu0 0
    %1441 = vmatpush1.bf16.msra.mxu0 0
    %1442 = vmatprep.subr.bf16.mxu0 0
    %1443 = vmatpush1.bf16.msra.mxu0 0
    %1444 = vmatprep.subr.bf16.mxu0 0
    %1445 = vmatpush1.bf16.msra.mxu0 0
    %1446 = vmatprep.subr.bf16.mxu0 0
    %1447 = vmatpush1.bf16.msra.mxu0 0
    %1448 = vmatprep.subr.bf16.mxu0 0
    %1449 = vmatpush1.bf16.msra.mxu0 0
    %1450 = vmatprep.subr.bf16.mxu0 0
    %1451 = vmatpush1.bf16.msra.mxu0 0
    %1452 = vmatprep.mubr.bf16.mxu0 0
    %1453 = vmatmul.mubr.bf16.gmra.mrb[0].mxu0 %v1415
    %v1454 = vpop.f32.mrb[0].mxu0
    %v1455 = vadd.f32 0.0, %v1454
    %v1456 = vpop.f32.mrb[0].mxu0
    %v1457 = vpop.f32.mrb[0].mxu0
    %v1458 = vpop.f32.mrb[0].mxu0
    %1459 = vdwg.mxu0
    %v1461 = vsel %vm734, %v1181, 0
    %v1464 = vsel %vm1186, %v732, 0
    %1466 = vmatprep.subr.bf16.mxu0 0
    %1467 = vmatpush1.bf16.msra.mxu0 %v1464
    %1468 = vmatprep.subr.bf16.mxu0 0
    %1469 = vmatpush1.bf16.msra.mxu0 0
    %1470 = vmatprep.subr.bf16.mxu0 0
    %1471 = vmatpush1.bf16.msra.mxu0 0
    %1472 = vmatprep.subr.bf16.mxu0 0
    %1473 = vmatpush1.bf16.msra.mxu0 0
    %1474 = vmatprep.subr.bf16.mxu0 0
    %1475 = vmatpush1.bf16.msra.mxu0 0
    %1476 = vmatprep.subr.bf16.mxu0 0
    %1477 = vmatpush1.bf16.msra.mxu0 0
    %1478 = vmatprep.subr.bf16.mxu0 0
    %1479 = vmatpush1.bf16.msra.mxu0 0
    %1480 = vmatprep.subr.bf16.mxu0 0
    %1481 = vmatpush1.bf16.msra.mxu0 0
    %1482 = vmatprep.subr.bf16.mxu0 0
    %1483 = vmatpush1.bf16.msra.mxu0 0
    %1484 = vmatprep.subr.bf16.mxu0 0
    %1485 = vmatpush1.bf16.msra.mxu0 0
    %1486 = vmatprep.subr.bf16.mxu0 0
    %1487 = vmatpush1.bf16.msra.mxu0 0
    %1488 = vmatprep.subr.bf16.mxu0 0
    %1489 = vmatpush1.bf16.msra.mxu0 0
    %1490 = vmatprep.subr.bf16.mxu0 0
    %1491 = vmatpush1.bf16.msra.mxu0 0
    %1492 = vmatprep.subr.bf16.mxu0 0
    %1493 = vmatpush1.bf16.msra.mxu0 0
    %1494 = vmatprep.subr.bf16.mxu0 0
    %1495 = vmatpush1.bf16.msra.mxu0 0
    %1496 = vmatprep.subr.bf16.mxu0 0
    %1497 = vmatpush1.bf16.msra.mxu0 0
    %1498 = vmatprep.mubr.bf16.mxu0 0
    %1499 = vmatmul.mubr.bf16.gmra.mrb[0].mxu0 %v1461
    %v1500 = vpop.f32.mrb[0].mxu0
    %v1501 = vadd.f32 0.0, %v1500
    %v1502 = vpop.f32.mrb[0].mxu0
    %v1503 = vpop.f32.mrb[0].mxu0
    %v1504 = vpop.f32.mrb[0].mxu0
    %1505 = vdwg.mxu0
    %v1507 = vsel %vm734, %v1182, 0
    %v1510 = vsel %vm1186, %v733, 0
    %1512 = vmatprep.subr.bf16.mxu0 0
    %1513 = vmatpush1.bf16.msra.mxu0 %v1510
    %1514 = vmatprep.subr.bf16.mxu0 0
    %1515 = vmatpush1.bf16.msra.mxu0 0
    %1516 = vmatprep.subr.bf16.mxu0 0
    %1517 = vmatpush1.bf16.msra.mxu0 0
    %1518 = vmatprep.subr.bf16.mxu0 0
    %1519 = vmatpush1.bf16.msra.mxu0 0
    %1520 = vmatprep.subr.bf16.mxu0 0
    %1521 = vmatpush1.bf16.msra.mxu0 0
    %1522 = vmatprep.subr.bf16.mxu0 0
    %1523 = vmatpush1.bf16.msra.mxu0 0
    %1524 = vmatprep.subr.bf16.mxu0 0
    %1525 = vmatpush1.bf16.msra.mxu0 0
    %1526 = vmatprep.subr.bf16.mxu0 0
    %1527 = vmatpush1.bf16.msra.mxu0 0
    %1528 = vmatprep.subr.bf16.mxu0 0
    %1529 = vmatpush1.bf16.msra.mxu0 0
    %1530 = vmatprep.subr.bf16.mxu0 0
    %1531 = vmatpush1.bf16.msra.mxu0 0
    %1532 = vmatprep.subr.bf16.mxu0 0
    %1533 = vmatpush1.bf16.msra.mxu0 0
    %1534 = vmatprep.subr.bf16.mxu0 0
    %1535 = vmatpush1.bf16.msra.mxu0 0
    %1536 = vmatprep.subr.bf16.mxu0 0
    %1537 = vmatpush1.bf16.msra.mxu0 0
    %1538 = vmatprep.subr.bf16.mxu0 0
    %1539 = vmatpush1.bf16.msra.mxu0 0
    %1540 = vmatprep.subr.bf16.mxu0 0
    %1541 = vmatpush1.bf16.msra.mxu0 0
    %1542 = vmatprep.subr.bf16.mxu0 0
    %1543 = vmatpush1.bf16.msra.mxu0 0
    %1544 = vmatprep.mubr.bf16.mxu0 0
    %1545 = vmatmul.mubr.bf16.gmra.mrb[0].mxu0 %v1507
    %v1546 = vpop.f32.mrb[0].mxu0
    %v1547 = vadd.f32 0.0, %v1546
    %v1548 = vpop.f32.mrb[0].mxu0
    %v1549 = vpop.f32.mrb[0].mxu0
    %v1550 = vpop.f32.mrb[0].mxu0
    %1551 = vdwg.mxu0
    %v1552 = vrcp.pop %v1153
    %v1553 = vrcp.pop %v1156
    %v1554 = vrcp.pop %v1159
    %v1555 = vrcp.pop %v1162
    %v1556 = vrcp.pop %v1165
    %v1557 = vrcp.pop %v1168
    %v1558 = vrcp.pop %v1171
    %v1559 = vrcp.pop %v1174
    %v1560 = vmul.f32 %v1225, %v1552
    %v1561 = vmul.f32 %v1271, %v1553
    %v1562 = vmul.f32 %v1317, %v1554
    %v1563 = vmul.f32 %v1363, %v1555
    %v1564 = vmul.f32 %v1409, %v1556
    %v1565 = vmul.f32 %v1455, %v1557
    %v1566 = vmul.f32 %v1501, %v1558
    %v1567 = vmul.f32 %v1547, %v1559
    %v1568 = vld [vmem:[%s2] sm:$0xf]
    %v1569 = vld [vmem:[%s2 + $0x4] sm:$0xf]
    %v1570 = vld [vmem:[%s2 + $0x8] sm:$0xf]
    %v1571 = vld [vmem:[%s2 + $0xc] sm:$0xf]
    %v1572 = vpack.c.bf16 %v1560, %v1560
    %v1573 = vpack.c.bf16 %v1561, %v1561
    %v1574 = vpack.c.bf16 %v1562, %v1562
    %v1575 = vpack.c.bf16 %v1563, %v1563
    %v1576 = vpack.c.bf16 %v1564, %v1564
    %v1577 = vpack.c.bf16 %v1565, %v1565
    %v1578 = vpack.c.bf16 %v1566, %v1566
    %v1579 = vpack.c.bf16 %v1567, %v1567
    %v1582 = vunpack.c.l.b16 %v1572
    %v1583 = vunpack.c.l.b16 %v1573
    %v1584 = vpack.c.b16 %v1583, %v1582
    %v1586 = vsel %vm734, %v1584, 0
    %v1589 = vsel %vm1186, %v1568, 0
    %1591 = vmatprep.subr.bf16.mxu0 0
    %1592 = vmatpush1.bf16.msra.mxu0 %v1589
    %1593 = vmatprep.subr.bf16.mxu0 0
    %1594 = vmatpush1.bf16.msra.mxu0 0
    %1595 = vmatprep.subr.bf16.mxu0 0
    %1596 = vmatpush1.bf16.msra.mxu0 0
    %1597 = vmatprep.subr.bf16.mxu0 0
    %1598 = vmatpush1.bf16.msra.mxu0 0
    %1599 = vmatprep.subr.bf16.mxu0 0
    %1600 = vmatpush1.bf16.msra.mxu0 0
    %1601 = vmatprep.subr.bf16.mxu0 0
    %1602 = vmatpush1.bf16.msra.mxu0 0
    %1603 = vmatprep.subr.bf16.mxu0 0
    %1604 = vmatpush1.bf16.msra.mxu0 0
    %1605 = vmatprep.subr.bf16.mxu0 0
    %1606 = vmatpush1.bf16.msra.mxu0 0
    %1607 = vmatprep.subr.bf16.mxu0 0
    %1608 = vmatpush1.bf16.msra.mxu0 0
    %1609 = vmatprep.subr.bf16.mxu0 0
    %1610 = vmatpush1.bf16.msra.mxu0 0
    %1611 = vmatprep.subr.bf16.mxu0 0
    %1612 = vmatpush1.bf16.msra.mxu0 0
    %1613 = vmatprep.subr.bf16.mxu0 0
    %1614 = vmatpush1.bf16.msra.mxu0 0
    %1615 = vmatprep.subr.bf16.mxu0 0
    %1616 = vmatpush1.bf16.msra.mxu0 0
    %1617 = vmatprep.subr.bf16.mxu0 0
    %1618 = vmatpush1.bf16.msra.mxu0 0
    %1619 = vmatprep.subr.bf16.mxu0 0
    %1620 = vmatpush1.bf16.msra.mxu0 0
    %1621 = vmatprep.subr.bf16.mxu0 0
    %1622 = vmatpush1.bf16.msra.mxu0 0
    %1623 = vmatprep.mubr.bf16.mxu0 0
    %1624 = vmatmul.mubr.bf16.gmra.mrb[0].mxu0 %v1586
    %v1625 = vpop.f32.mrb[0].mxu0
    %v1626 = vadd.f32 0.0, %v1625
    %v1627 = vpop.f32.mrb[0].mxu0
    %v1628 = vpop.f32.mrb[0].mxu0
    %v1629 = vadd.f32 0.0, %v1628
    %v1630 = vpop.f32.mrb[0].mxu0
    %1631 = vdwg.mxu0
    %v1634 = vunpack.c.l.b16 %v1574
    %v1635 = vunpack.c.l.b16 %v1575
    %v1636 = vpack.c.b16 %v1635, %v1634
    %v1638 = vsel %vm734, %v1636, 0
    %v1641 = vsel %vm1186, %v1569, 0
    %1643 = vmatprep.subr.bf16.mxu0 0
    %1644 = vmatpush1.bf16.msra.mxu0 %v1641
    %1645 = vmatprep.subr.bf16.mxu0 0
    %1646 = vmatpush1.bf16.msra.mxu0 0
    %1647 = vmatprep.subr.bf16.mxu0 0
    %1648 = vmatpush1.bf16.msra.mxu0 0
    %1649 = vmatprep.subr.bf16.mxu0 0
    %1650 = vmatpush1.bf16.msra.mxu0 0
    %1651 = vmatprep.subr.bf16.mxu0 0
    %1652 = vmatpush1.bf16.msra.mxu0 0
    %1653 = vmatprep.subr.bf16.mxu0 0
    %1654 = vmatpush1.bf16.msra.mxu0 0
    %1655 = vmatprep.subr.bf16.mxu0 0
    %1656 = vmatpush1.bf16.msra.mxu0 0
    %1657 = vmatprep.subr.bf16.mxu0 0
    %1658 = vmatpush1.bf16.msra.mxu0 0
    %1659 = vmatprep.subr.bf16.mxu0 0
    %1660 = vmatpush1.bf16.msra.mxu0 0
    %1661 = vmatprep.subr.bf16.mxu0 0
    %1662 = vmatpush1.bf16.msra.mxu0 0
    %1663 = vmatprep.subr.bf16.mxu0 0
    %1664 = vmatpush1.bf16.msra.mxu0 0
    %1665 = vmatprep.subr.bf16.mxu0 0
    %1666 = vmatpush1.bf16.msra.mxu0 0
    %1667 = vmatprep.subr.bf16.mxu0 0
    %1668 = vmatpush1.bf16.msra.mxu0 0
    %1669 = vmatprep.subr.bf16.mxu0 0
    %1670 = vmatpush1.bf16.msra.mxu0 0
    %1671 = vmatprep.subr.bf16.mxu0 0
    %1672 = vmatpush1.bf16.msra.mxu0 0
    %1673 = vmatprep.subr.bf16.mxu0 0
    %1674 = vmatpush1.bf16.msra.mxu0 0
    %1675 = vmatprep.mubr.bf16.mxu0 0
    %1676 = vmatmul.mubr.bf16.gmra.mrb[0].mxu0 %v1638
    %v1677 = vpop.f32.mrb[0].mxu0
    %v1678 = vadd.f32 0.0, %v1677
    %v1679 = vpop.f32.mrb[0].mxu0
    %v1680 = vpop.f32.mrb[0].mxu0
    %v1681 = vadd.f32 0.0, %v1680
    %v1682 = vpop.f32.mrb[0].mxu0
    %1683 = vdwg.mxu0
    %v1686 = vunpack.c.l.b16 %v1576
    %v1687 = vunpack.c.l.b16 %v1577
    %v1688 = vpack.c.b16 %v1687, %v1686
    %v1690 = vsel %vm734, %v1688, 0
    %v1693 = vsel %vm1186, %v1570, 0
    %1695 = vmatprep.subr.bf16.mxu0 0
    %1696 = vmatpush1.bf16.msra.mxu0 %v1693
    %1697 = vmatprep.subr.bf16.mxu0 0
    %1698 = vmatpush1.bf16.msra.mxu0 0
    %1699 = vmatprep.subr.bf16.mxu0 0
    %1700 = vmatpush1.bf16.msra.mxu0 0
    %1701 = vmatprep.subr.bf16.mxu0 0
    %1702 = vmatpush1.bf16.msra.mxu0 0
    %1703 = vmatprep.subr.bf16.mxu0 0
    %1704 = vmatpush1.bf16.msra.mxu0 0
    %1705 = vmatprep.subr.bf16.mxu0 0
    %1706 = vmatpush1.bf16.msra.mxu0 0
    %1707 = vmatprep.subr.bf16.mxu0 0
    %1708 = vmatpush1.bf16.msra.mxu0 0
    %1709 = vmatprep.subr.bf16.mxu0 0
    %1710 = vmatpush1.bf16.msra.mxu0 0
    %1711 = vmatprep.subr.bf16.mxu0 0
    %1712 = vmatpush1.bf16.msra.mxu0 0
    %1713 = vmatprep.subr.bf16.mxu0 0
    %1714 = vmatpush1.bf16.msra.mxu0 0
    %1715 = vmatprep.subr.bf16.mxu0 0
    %1716 = vmatpush1.bf16.msra.mxu0 0
    %1717 = vmatprep.subr.bf16.mxu0 0
    %1718 = vmatpush1.bf16.msra.mxu0 0
    %1719 = vmatprep.subr.bf16.mxu0 0
    %1720 = vmatpush1.bf16.msra.mxu0 0
    %1721 = vmatprep.subr.bf16.mxu0 0
    %1722 = vmatpush1.bf16.msra.mxu0 0
    %1723 = vmatprep.subr.bf16.mxu0 0
    %1724 = vmatpush1.bf16.msra.mxu0 0
    %1725 = vmatprep.subr.bf16.mxu0 0
    %1726 = vmatpush1.bf16.msra.mxu0 0
    %1727 = vmatprep.mubr.bf16.mxu0 0
    %1728 = vmatmul.mubr.bf16.gmra.mrb[0].mxu0 %v1690
    %v1729 = vpop.f32.mrb[0].mxu0
    %v1730 = vadd.f32 0.0, %v1729
    %v1731 = vpop.f32.mrb[0].mxu0
    %v1732 = vpop.f32.mrb[0].mxu0
    %v1733 = vadd.f32 0.0, %v1732
    %v1734 = vpop.f32.mrb[0].mxu0
    %1735 = vdwg.mxu0
    %v1738 = vunpack.c.l.b16 %v1578
    %v1739 = vunpack.c.l.b16 %v1579
    %v1740 = vpack.c.b16 %v1739, %v1738
    %v1742 = vsel %vm734, %v1740, 0
    %v1745 = vsel %vm1186, %v1571, 0
    %1747 = vmatprep.subr.bf16.mxu0 0
    %1748 = vmatpush1.bf16.msra.mxu0 %v1745
    %1749 = vmatprep.subr.bf16.mxu0 0
    %1750 = vmatpush1.bf16.msra.mxu0 0
    %1751 = vmatprep.subr.bf16.mxu0 0
    %1752 = vmatpush1.bf16.msra.mxu0 0
    %1753 = vmatprep.subr.bf16.mxu0 0
    %1754 = vmatpush1.bf16.msra.mxu0 0
    %1755 = vmatprep.subr.bf16.mxu0 0
    %1756 = vmatpush1.bf16.msra.mxu0 0
    %1757 = vmatprep.subr.bf16.mxu0 0
    %1758 = vmatpush1.bf16.msra.mxu0 0
    %1759 = vmatprep.subr.bf16.mxu0 0
    %1760 = vmatpush1.bf16.msra.mxu0 0
    %1761 = vmatprep.subr.bf16.mxu0 0
    %1762 = vmatpush1.bf16.msra.mxu0 0
    %1763 = vmatprep.subr.bf16.mxu0 0
    %1764 = vmatpush1.bf16.msra.mxu0 0
    %1765 = vmatprep.subr.bf16.mxu0 0
    %1766 = vmatpush1.bf16.msra.mxu0 0
    %1767 = vmatprep.subr.bf16.mxu0 0
    %1768 = vmatpush1.bf16.msra.mxu0 0
    %1769 = vmatprep.subr.bf16.mxu0 0
    %1770 = vmatpush1.bf16.msra.mxu0 0
    %1771 = vmatprep.subr.bf16.mxu0 0
    %1772 = vmatpush1.bf16.msra.mxu0 0
    %1773 = vmatprep.subr.bf16.mxu0 0
    %1774 = vmatpush1.bf16.msra.mxu0 0
    %1775 = vmatprep.subr.bf16.mxu0 0
    %1776 = vmatpush1.bf16.msra.mxu0 0
    %1777 = vmatprep.subr.bf16.mxu0 0
    %1778 = vmatpush1.bf16.msra.mxu0 0
    %1779 = vmatprep.mubr.bf16.mxu0 0
    %1780 = vmatmul.mubr.bf16.gmra.mrb[0].mxu0 %v1742
    %v1781 = vpop.f32.mrb[0].mxu0
    %v1782 = vadd.f32 0.0, %v1781
    %v1783 = vpop.f32.mrb[0].mxu0
    %v1784 = vpop.f32.mrb[0].mxu0
    %v1785 = vadd.f32 0.0, %v1784
    %v1786 = vpop.f32.mrb[0].mxu0
    %1787 = vdwg.mxu0
    %v1788 = vsel %vm82, %v1626, 0.0
    %v1789 = vsel %vm82, %v1678, 0.0
    %v1790 = vadd.f32 %v1788, %v1789
    %v1791 = vsel %vm82, %v1730, 0.0
    %v1792 = vadd.f32 %v1790, %v1791
    %v1793 = vsel %vm82, %v1782, 0.0
    %v1794 = vadd.f32 %v1792, %v1793
    %v1795 = vsel %vm82, %v1629, 0.0
    %v1796 = vsel %vm82, %v1681, 0.0
    %v1797 = vadd.f32 %v1795, %v1796
    %v1798 = vsel %vm82, %v1733, 0.0
    %v1799 = vadd.f32 %v1797, %v1798
    %v1800 = vsel %vm82, %v1785, 0.0
    %v1801 = vadd.f32 %v1799, %v1800
    %v1802 = vld [vmem:[%s3] sm:$0x1]
    %v1804 = vlaneseq
    %v1805 = vshrl.u32 %v1804, 7
    %v1806 = vsub.s32 0, %v1805
    %v1807 = vrot.slane %v1802, %v1806
    %v1809 = vadd.f32 %v1794, %v1807
    %v1810 = vadd.f32 %v1801, %v1807
    %1811 = vst.msk [vmem:[#allocation2] sm:$0xff] %vm82, %v1809
    %1812 = vst.msk [vmem:[#allocation2 + $0x8] sm:$0xff] %vm82, %v1810
    // Predicated region
    $region18: #{tpu_custom_call.1} parent=1 // pred_check
      _
    $region19: #{tpu_custom_call.1} parent=1 // pred_check_branch
      %1814 = sbr.rel (0) target = $region21
    $region20: #{tpu_custom_call.1} parent=1 // pred_region
      %s1816 = ssub.s32 256, 256
      %1817 = vsyncadd [#allocation3], %s1816
      %s1818 = sshll.u32 [#allocation2], 4
      %s1819 = int_to_ptr.vmem [resolvable:$true] %s1818
      %1824 = dma.vmem_to_hbm [thread:$0]  %s1819, 256, %s4, [#allocation3], 128, 128, 8
    $region21: #{tpu_custom_call.1} parent=1 // pred_fallthru
      _
    // Predicated region
    $region22: #{tpu_custom_call.1} parent=1 // pred_check
      _
    $region23: #{tpu_custom_call.1} parent=1 // pred_check_branch
      %1826 = sbr.rel (0) target = $region25
    $region24: #{tpu_custom_call.1} parent=1 // pred_region
      %1827 = dma.done [#allocation3], 256
    $region25: #{tpu_custom_call.1} parent=1 // pred_fallthru
      _
    %1828 = vsyncpa [#allocation3], 1

</llo_original>
